<compile_context>
chip_gen: v5e
topology: v5e:2x2
jax: 0.10.0
libtpu: 0.0.40
codegen_flags: <defaults>
</compile_context>

<pallas_src>
import math

import jax
import jax.numpy as jnp
from jax.experimental import pallas as pl
from jax.experimental.pallas import tpu as pltpu

NUM_HEADS = 8          # matches num_heads=8 in the module
LN_EPS = 1e-5          # nn.LayerNorm default

# rows of the packed (1, H) bias / LayerNorm vector slab
_BO, _LN1G, _LN1B, _B2, _LN2G, _LN2B, _HBV, _HBO, _HLNG, _HLNB = range(10)
_NUM_VEC_ROWS = 10


def _layer_norm(x, g, b, eps=LN_EPS):
    mean = jnp.mean(x, axis=-1, keepdims=True)
    var = jnp.mean(jnp.square(x - mean), axis=-1, keepdims=True)
    return (x - mean) * jax.lax.rsqrt(var + eps) * g + b


# ----------------------------------------------------------------------------
# Fused kernel: encoder layer -> CLS row -> cultural head -> classifiers
# ----------------------------------------------------------------------------
def _fused_kernel(emb_ref, mask_ref,
                  wqkv_ref, bqkv_ref, wo_ref,
                  w1_ref, b1_ref, w2_ref,
                  hwv_ref, hwo_ref,
                  wcls_ref, bcls_ref,
                  vec_ref,
                  out_ref,
                  ctx_ref):
    f32, bf16 = jnp.float32, jnp.bfloat16

    x_bf = emb_ref[...]                          # (TB, S, H) bf16 (streamed)
    TB, S, H = x_bf.shape
    hd = H // NUM_HEADS
    scale = 1.0 / math.sqrt(hd)

    x = x_bf.astype(f32)                         # f32 residual stream (cast once)
    vec = vec_ref[...]                           # (10, H) f32 bias/LN slab

    def vrow(i):                                 # (1, H) row; broadcasts everywhere
        return vec[i:i + 1, :]

    # hoisted out of the head loop: 0.0 keep / -1e9 pad
    add_mask = (mask_ref[...] - 1.0) * 1e9       # (TB, 1, S)

    # --- multi-head self-attention -------------------------------------------
    # TODO(synk): the pretrained 12-layer mBERT checkpoint cannot be reproduced
    # in-script; this deterministic single-layer encoder with the identical
    # block structure stands in for `self.transformer`.
    x2d = x_bf.reshape(TB * S, H)
    qkv = jnp.dot(x2d, wqkv_ref[...],            # fused QKV: one (H,3H) matmul
                  preferred_element_type=f32) + bqkv_ref[...]
    qkv_bf = qkv.astype(bf16).reshape(TB, S, 3 * H)   # single big cast (v5e)

    for h in range(NUM_HEADS):                   # only the intrinsically per-head part
        q_h = qkv_bf[:, :, h * hd:(h + 1) * hd]
        k_h = qkv_bf[:, :, H + h * hd:H + (h + 1) * hd]
        v_h = qkv_bf[:, :, 2 * H + h * hd:2 * H + (h + 1) * hd]
        s = jnp.einsum('bqd,bkd->bqk', q_h, k_h,
                       preferred_element_type=f32) * scale + add_mask
        s = s - jnp.max(s, axis=-1, keepdims=True)
        p = jnp.exp(s)                                               # EUP
        p = p * pl.reciprocal(jnp.sum(p, axis=-1, keepdims=True), approx=True)
        ctx_h = jnp.einsum('bqk,bkd->bqd', p.astype(bf16), v_h,
                           preferred_element_type=f32)
        # concat-over-heads assembled in a VMEM scratch slab (lane slice store)
        ctx_ref[:, :, h * hd:(h + 1) * hd] = ctx_h.astype(bf16)

    ctx2d = ctx_ref[...].reshape(TB * S, H)      # (TB*S, H) bf16 concatenated heads
    attn = (jnp.dot(ctx2d, wo_ref[...],          # single fused output projection
                    preferred_element_type=f32) + vrow(_BO)).reshape(TB, S, H)
    x = _layer_norm(x + attn, vrow(_LN1G), vrow(_LN1B))

    # --- feed-forward ---------------------------------------------------------
    h1 = jnp.dot(x.astype(bf16).reshape(TB * S, H), w1_ref[...],
                 preferred_element_type=f32) + b1_ref[...]
    # TODO(synk): HF BERT uses the erf-based GELU; tanh approximation is kept
    # for robust Mosaic lowering (backbone weights are synthetic anyway).
    h1 = jax.nn.gelu(h1, approximate=True)
    ffn = (jnp.dot(h1.astype(bf16), w2_ref[...],
                   preferred_element_type=f32) + vrow(_B2)).reshape(TB, S, H)
    hidden = _layer_norm(x + ffn, vrow(_LN2G), vrow(_LN2B))

    # --- fused head: only the CLS row is consumed downstream ------------------
    cls = hidden[:, 0, :]                        # (TB, H) == last_hidden_state[:, 0, :]
    # nn.MultiheadAttention over a length-1 sequence: softmax over a single key
    # is exactly 1 for every head, so the output equals out_proj(v_proj(x)).
    v = jnp.dot(cls.astype(bf16), hwv_ref[...],
                preferred_element_type=f32) + vrow(_HBV)
    attended = jnp.dot(v.astype(bf16), hwo_ref[...],
                       preferred_element_type=f32) + vrow(_HBO)
    normed = _layer_norm(attended + cls, vrow(_HLNG), vrow(_HLNB))
    # dropout: eval -> identity.  8 x Linear(H, 1) fused as one (H, LPAD) matmul
    # (zero-padded beyond num_labels -> lane-dense, 2-D unmasked-lane store).
    logits = jnp.dot(normed.astype(bf16), wcls_ref[...],
                     preferred_element_type=f32) + bcls_ref[...]
    out_ref[...] = logits                        # (TB, LPAD)


# ----------------------------------------------------------------------------
# Parameter initialization (deterministic, synthetic; canonical f32 layouts)
# ----------------------------------------------------------------------------
def init_params(key, vocab, seq, hidden, ffn, num_labels):
    ks = jax.random.split(key, 16)
    s = 0.02
    return {
        # embeddings (glue: gather done in plain JAX)
        "word_emb": jax.random.normal(ks[0], (vocab, hidden), jnp.float32) * s,
        "pos_emb": jax.random.normal(ks[1], (seq, hidden), jnp.float32) * s,
        # encoder layer
        "wq": jax.random.normal(ks[2], (hidden, hidden), jnp.float32) * s,
        "wk": jax.random.normal(ks[3], (hidden, hidden), jnp.float32) * s,
        "wv": jax.random.normal(ks[4], (hidden, hidden), jnp.float32) * s,
        "wo": jax.random.normal(ks[5], (hidden, hidden), jnp.float32) * s,
        "bq": jnp.zeros((1, hidden), jnp.float32),
        "bk": jnp.zeros((1, hidden), jnp.float32),
        "bv": jnp.zeros((1, hidden), jnp.float32),
        "bo": jnp.zeros((1, hidden), jnp.float32),
        "ln1g": jnp.ones((1, hidden), jnp.float32),
        "ln1b": jnp.zeros((1, hidden), jnp.float32),
        "w1": jax.random.normal(ks[6], (hidden, ffn), jnp.float32) * s,
        "b1": jnp.zeros((1, ffn), jnp.float32),
        "w2": jax.random.normal(ks[7], (ffn, hidden), jnp.float32) * s,
        "b2": jnp.zeros((1, hidden), jnp.float32),
        "ln2g": jnp.ones((1, hidden), jnp.float32),
        "ln2b": jnp.zeros((1, hidden), jnp.float32),
        # cultural_attention (only V / out_proj matter for a length-1 sequence)
        "h_wv": jax.random.normal(ks[8], (hidden, hidden), jnp.float32) * s,
        "h_bv": jnp.zeros((1, hidden), jnp.float32),
        "h_wo": jax.random.normal(ks[9], (hidden, hidden), jnp.float32) * s,
        "h_bo": jnp.zeros((1, hidden), jnp.float32),
        # cultural_norm
        "h_lng": jnp.ones((1, hidden), jnp.float32),
        "h_lnb": jnp.zeros((1, hidden), jnp.float32),
        # 8 x Linear(hidden, 1) stacked -> (hidden, num_labels); identical to
        # torch.cat([clf(x) for clf in classifiers], dim=1)
        "wcls": jax.random.normal(ks[10], (hidden, num_labels), jnp.float32) * s,
        "bcls": jax.random.normal(ks[11], (1, num_labels), jnp.float32) * s,
    }


# ----------------------------------------------------------------------------
# Forward
# ----------------------------------------------------------------------------
def cultural_pattern_classifier(params, input_ids, attention_mask):
    B, S = input_ids.shape
    H = params["word_emb"].shape[1]
    F = params["w1"].shape[1]
    L = params["wcls"].shape[1]
    LPAD = pl.cdiv(L, 128) * 128            # lane-dense output width
    bf16 = jnp.bfloat16

    # batch tile: TB >= 8 gives (8,128)-aligned stores and a full MXU M dim; at
    # small B collapse to a single grid step (TB = B, grid = (1,)).
    TB = min(B, 8)
    while B % TB:
        TB -= 1
    grid = (B // TB,)

    # --- glue: embedding gather (plain JAX); streamed into the kernel in bf16 ---
    # TODO(synk): vocabulary-table gather has no clean single-kernel Pallas form.
    emb = (params["word_emb"][input_ids] + params["pos_emb"][None, :, :]).astype(bf16)
    mask = attention_mask.astype(jnp.float32)[:, None, :]        # (B, 1, S)

    # --- fused / packed resident weights (bf16 MXU operands, f32 vectors) ---
    wqkv = jnp.concatenate([params["wq"], params["wk"], params["wv"]],
                           axis=1).astype(bf16)                   # (H, 3H)
    bqkv = jnp.concatenate([params["bq"], params["bk"], params["bv"]],
                           axis=1)                                # (1, 3H) f32
    wcls = jnp.zeros((H, LPAD), jnp.float32).at[:, :L].set(params["wcls"]).astype(bf16)
    bcls = jnp.zeros((1, LPAD), jnp.float32).at[:, :L].set(params["bcls"])
    vec = jnp.concatenate([params["bo"], params["ln1g"], params["ln1b"],
                           params["b2"], params["ln2g"], params["ln2b"],
                           params["h_bv"], params["h_bo"],
                           params["h_lng"], params["h_lnb"]], axis=0)  # (10, H)

    weights = (wqkv, bqkv, params["wo"].astype(bf16),
               params["w1"].astype(bf16), params["b1"],
               params["w2"].astype(bf16),
               params["h_wv"].astype(bf16), params["h_wo"].astype(bf16),
               wcls, bcls, vec)

    def _batch_spec(shape):
        n = len(shape) - 1
        return pl.BlockSpec((TB,) + tuple(shape[1:]),
                            lambda i, _n=n: (i,) + (0,) * _n)

    def _resident_spec(arr):                 # full array, constant block index
        n = arr.ndim
        return pl.BlockSpec(tuple(arr.shape), lambda i, _n=n: (0,) * _n)

    in_specs = ([_batch_spec(emb.shape), _batch_spec(mask.shape)]
                + [_resident_spec(w) for w in weights])
    out_specs = pl.BlockSpec((TB, LPAD), lambda i: (i, 0))

    # advisory cost estimate so XLA can schedule surrounding ops (gather, etc.)
    flops = int(B * S * (8 * H * H + 4 * S * H + 4 * H * F)
                + 4 * B * H * H + 2 * B * H * LPAD)
    transcendentals = int(B * NUM_HEADS * S * S + B * S * F)
    bytes_accessed = int(emb.size * emb.dtype.itemsize + mask.size * 4
                         + sum(int(w.size) * w.dtype.itemsize for w in weights)
                         + B * LPAD * 4)

    out = pl.pallas_call(
        _fused_kernel,
        out_shape=jax.ShapeDtypeStruct((B, LPAD), jnp.float32),
        grid=grid,
        in_specs=in_specs,
        out_specs=out_specs,
        scratch_shapes=[pltpu.VMEM((TB, S, H), jnp.bfloat16)],     # concat-head ctx
        compiler_params=pltpu.CompilerParams(
            dimension_semantics=("parallel",),
            # 48 MiB is within v7x's 64 MiB/TC and well under v5e/v6e's 128 MiB;
            # raise toward 96 MiB on v6e at BERT scale.
            vmem_limit_bytes=48 * 1024 * 1024),
        cost_estimate=pl.CostEstimate(flops=flops,
                                      transcendentals=transcendentals,
                                      bytes_accessed=bytes_accessed),
    )(emb, mask, *weights)

    return out[:, :L]                         # strip lane padding -> (B, num_labels)


if __name__ == "__main__":
    B, S, H, F, L, VOCAB = 2, 8, 32, 64, 8, 128

    key = jax.random.PRNGKey(0)
    k_params, k_ids = jax.random.split(key)

    params = init_params(k_params, VOCAB, S, H, F, L)
    input_ids = jax.random.randint(k_ids, (B, S), 0, VOCAB, dtype=jnp.int32)
    input_ids = input_ids.at[:, 0].set(1)        # CLS token id
    attention_mask = jnp.ones((B, S), dtype=jnp.int32)

    logits = jax.jit(cultural_pattern_classifier)(params, input_ids, attention_mask)
    logits = jax.block_until_ready(logits)

    assert logits.shape == (B, L) and logits.dtype == jnp.float32
    print("KERNEL_OK")
</pallas_src>

<mosaic_0001>
module attributes {stable_mosaic.version = 11 : i64} {
  func.func @_fused_kernel(%arg0: i32, %arg1: memref<2x8x32xbf16, #tpu.memory_space<vmem>>, %arg2: memref<2x1x8xf32, #tpu.memory_space<vmem>>, %arg3: memref<32x96xbf16, #tpu.memory_space<vmem>>, %arg4: memref<1x96xf32, #tpu.memory_space<vmem>>, %arg5: memref<32x32xbf16, #tpu.memory_space<vmem>>, %arg6: memref<32x64xbf16, #tpu.memory_space<vmem>>, %arg7: memref<1x64xf32, #tpu.memory_space<vmem>>, %arg8: memref<64x32xbf16, #tpu.memory_space<vmem>>, %arg9: memref<32x32xbf16, #tpu.memory_space<vmem>>, %arg10: memref<32x32xbf16, #tpu.memory_space<vmem>>, %arg11: memref<32x128xbf16, #tpu.memory_space<vmem>>, %arg12: memref<1x128xf32, #tpu.memory_space<vmem>>, %arg13: memref<10x32xf32, #tpu.memory_space<vmem>>, %arg14: memref<2x128xf32, #tpu.memory_space<vmem>>, %arg15: memref<2x8x32xbf16, #tpu.memory_space<vmem>>) attributes {dimension_semantics = [#tpu.dimension_semantics<parallel>], iteration_bounds = array<i64: 1>, scalar_prefetch = 0 : i64, scratch_operands = 1 : i64, tpu.core_type = #tpu.core_type<tc>, window_params = [{transform_indices = @transform_0, window_bounds = array<i64: 2, 8, 32>}, {transform_indices = @transform_1, window_bounds = array<i64: 2, 1, 8>}, {pipeline_mode = #tpu.pipeline_mode<synchronous>, transform_indices = @transform_2, window_bounds = array<i64: 32, 96>}, {pipeline_mode = #tpu.pipeline_mode<synchronous>, transform_indices = @transform_3, window_bounds = array<i64: 1, 96>}, {pipeline_mode = #tpu.pipeline_mode<synchronous>, transform_indices = @transform_4, window_bounds = array<i64: 32, 32>}, {pipeline_mode = #tpu.pipeline_mode<synchronous>, transform_indices = @transform_5, window_bounds = array<i64: 32, 64>}, {pipeline_mode = #tpu.pipeline_mode<synchronous>, transform_indices = @transform_6, window_bounds = array<i64: 1, 64>}, {pipeline_mode = #tpu.pipeline_mode<synchronous>, transform_indices = @transform_7, window_bounds = array<i64: 64, 32>}, {pipeline_mode = #tpu.pipeline_mode<synchronous>, transform_indices = @transform_8, window_bounds = array<i64: 32, 32>}, {pipeline_mode = #tpu.pipeline_mode<synchronous>, transform_indices = @transform_9, window_bounds = array<i64: 32, 32>}, {pipeline_mode = #tpu.pipeline_mode<synchronous>, transform_indices = @transform_10, window_bounds = array<i64: 32, 128>}, {pipeline_mode = #tpu.pipeline_mode<synchronous>, transform_indices = @transform_11, window_bounds = array<i64: 1, 128>}, {pipeline_mode = #tpu.pipeline_mode<synchronous>, transform_indices = @transform_12, window_bounds = array<i64: 10, 32>}, {transform_indices = @transform_13, window_bounds = array<i64: 2, 128>}]} {
    %c0 = arith.constant 0 : index
    %c0_0 = arith.constant 0 : index
    %c0_1 = arith.constant 0 : index
    %0 = vector.load %arg1[%c0, %c0_0, %c0_1] : memref<2x8x32xbf16, #tpu.memory_space<vmem>>, vector<2x8x32xbf16>
    %1 = arith.extf %0 : vector<2x8x32xbf16> to vector<2x8x32xf32>
    %c0_2 = arith.constant 0 : index
    %c0_3 = arith.constant 0 : index
    %2 = vector.load %arg13[%c0_2, %c0_3] : memref<10x32xf32, #tpu.memory_space<vmem>>, vector<10x32xf32>
    %c0_4 = arith.constant 0 : index
    %c0_5 = arith.constant 0 : index
    %c0_6 = arith.constant 0 : index
    %3 = vector.load %arg2[%c0_4, %c0_5, %c0_6] : memref<2x1x8xf32, #tpu.memory_space<vmem>>, vector<2x1x8xf32>
    %cst = arith.constant 1.000000e+00 : f32
    %4 = vector.broadcast %cst : f32 to vector<2x1x8xf32>
    %5 = arith.subf %3, %4 : vector<2x1x8xf32>
    %cst_7 = arith.constant 1.000000e+09 : f32
    %6 = vector.broadcast %cst_7 : f32 to vector<2x1x8xf32>
    %7 = arith.mulf %5, %6 : vector<2x1x8xf32>
    %8 = vector.shape_cast %0 : vector<2x8x32xbf16> to vector<16x32xbf16>
    %c0_8 = arith.constant 0 : index
    %c0_9 = arith.constant 0 : index
    %9 = vector.load %arg3[%c0_8, %c0_9] : memref<32x96xbf16, #tpu.memory_space<vmem>>, vector<32x96xbf16>
    %cst_10 = arith.constant dense<0.000000e+00> : vector<16x96xf32>
    %10 = tpu.matmul %8, %9, %cst_10 {dimension_numbers = #tpu.dot_dimension_numbers<[1], [0], [0], [1], [0, 0, 1, 1], [], []>} : vector<16x32xbf16>, vector<32x96xbf16>, vector<16x96xf32> -> vector<16x96xf32>
    %c0_11 = arith.constant 0 : index
    %c0_12 = arith.constant 0 : index
    %11 = vector.load %arg4[%c0_11, %c0_12] : memref<1x96xf32, #tpu.memory_space<vmem>>, vector<1x96xf32>
    %12 = vector.broadcast %11 : vector<1x96xf32> to vector<16x96xf32>
    %13 = arith.addf %10, %12 : vector<16x96xf32>
    %14 = arith.truncf %13 : vector<16x96xf32> to vector<16x96xbf16>
    %15 = vector.shape_cast %14 : vector<16x96xbf16> to vector<2x8x96xbf16>
    %16 = vector.extract_strided_slice %15 {offsets = [0, 0, 0], sizes = [2, 8, 4], strides = [1, 1, 1]} : vector<2x8x96xbf16> to vector<2x8x4xbf16>
    %17 = vector.extract_strided_slice %15 {offsets = [0, 0, 32], sizes = [2, 8, 4], strides = [1, 1, 1]} : vector<2x8x96xbf16> to vector<2x8x4xbf16>
    %18 = vector.extract_strided_slice %15 {offsets = [0, 0, 64], sizes = [2, 8, 4], strides = [1, 1, 1]} : vector<2x8x96xbf16> to vector<2x8x4xbf16>
    "tpu.trace_start"() <{level = 10 : i32, message = "bqd,bkd->bqk"}> : () -> ()
    %cst_13 = arith.constant dense<0.000000e+00> : vector<2x8x8xf32>
    %19 = tpu.matmul %16, %17, %cst_13 {dimension_numbers = #tpu.dot_dimension_numbers<[2], [2], [1], [1], [0, 0, 0, 1, 1, 1], [0], [0]>} : vector<2x8x4xbf16>, vector<2x8x4xbf16>, vector<2x8x8xf32> -> vector<2x8x8xf32>
    "tpu.trace_stop"() : () -> ()
    %cst_14 = arith.constant 5.000000e-01 : f32
    %20 = vector.broadcast %cst_14 : f32 to vector<2x8x8xf32>
    %21 = arith.mulf %19, %20 : vector<2x8x8xf32>
    %22 = vector.broadcast %7 : vector<2x1x8xf32> to vector<2x8x8xf32>
    %23 = arith.addf %21, %22 : vector<2x8x8xf32>
    %cst_15 = arith.constant dense<0xFF800000> : vector<2x8xf32>
    %24 = vector.multi_reduction <maximumf>, %23, %cst_15 [2] : vector<2x8x8xf32> to vector<2x8xf32>
    %25 = vector.shape_cast %24 : vector<2x8xf32> to vector<2x8x1xf32>
    %26 = vector.broadcast %25 : vector<2x8x1xf32> to vector<2x8x8xf32>
    %27 = arith.subf %23, %26 : vector<2x8x8xf32>
    %28 = math.exp %27 : vector<2x8x8xf32>
    %cst_16 = arith.constant dense<0.000000e+00> : vector<2x8xf32>
    %29 = vector.multi_reduction <add>, %28, %cst_16 [2] : vector<2x8x8xf32> to vector<2x8xf32>
    %30 = vector.shape_cast %29 : vector<2x8xf32> to vector<2x8x1xf32>
    %31 = tpu.reciprocal %30 {approx = true} : vector<2x8x1xf32> -> vector<2x8x1xf32>
    %32 = vector.broadcast %31 : vector<2x8x1xf32> to vector<2x8x8xf32>
    %33 = arith.mulf %28, %32 : vector<2x8x8xf32>
    %34 = arith.truncf %33 : vector<2x8x8xf32> to vector<2x8x8xbf16>
    "tpu.trace_start"() <{level = 10 : i32, message = "bqk,bkd->bqd"}> : () -> ()
    %cst_17 = arith.constant dense<0.000000e+00> : vector<2x8x4xf32>
    %35 = tpu.matmul %34, %18, %cst_17 {dimension_numbers = #tpu.dot_dimension_numbers<[2], [1], [1], [2], [0, 0, 0, 1, 1, 2], [0], [0]>} : vector<2x8x8xbf16>, vector<2x8x4xbf16>, vector<2x8x4xf32> -> vector<2x8x4xf32>
    "tpu.trace_stop"() : () -> ()
    %36 = arith.truncf %35 : vector<2x8x4xf32> to vector<2x8x4xbf16>
    %c0_18 = arith.constant 0 : index
    %c0_19 = arith.constant 0 : index
    %c0_20 = arith.constant 0 : index
    %37 = vector.load %arg15[%c0_18, %c0_19, %c0_20] : memref<2x8x32xbf16, #tpu.memory_space<vmem>>, vector<2x8x4xbf16>
    tpu.vector_store %arg15[%c0_18, %c0_19, %c0_20], %36 {strides = array<i32>} : memref<2x8x32xbf16, #tpu.memory_space<vmem>>, vector<2x8x4xbf16>,
    %38 = vector.extract_strided_slice %15 {offsets = [0, 0, 4], sizes = [2, 8, 4], strides = [1, 1, 1]} : vector<2x8x96xbf16> to vector<2x8x4xbf16>
    %39 = vector.extract_strided_slice %15 {offsets = [0, 0, 36], sizes = [2, 8, 4], strides = [1, 1, 1]} : vector<2x8x96xbf16> to vector<2x8x4xbf16>
    %40 = vector.extract_strided_slice %15 {offsets = [0, 0, 68], sizes = [2, 8, 4], strides = [1, 1, 1]} : vector<2x8x96xbf16> to vector<2x8x4xbf16>
    "tpu.trace_start"() <{level = 10 : i32, message = "bqd,bkd->bqk"}> : () -> ()
    %cst_21 = arith.constant dense<0.000000e+00> : vector<2x8x8xf32>
    %41 = tpu.matmul %38, %39, %cst_21 {dimension_numbers = #tpu.dot_dimension_numbers<[2], [2], [1], [1], [0, 0, 0, 1, 1, 1], [0], [0]>} : vector<2x8x4xbf16>, vector<2x8x4xbf16>, vector<2x8x8xf32> -> vector<2x8x8xf32>
    "tpu.trace_stop"() : () -> ()
    %cst_22 = arith.constant 5.000000e-01 : f32
    %42 = vector.broadcast %cst_22 : f32 to vector<2x8x8xf32>
    %43 = arith.mulf %41, %42 : vector<2x8x8xf32>
    %44 = vector.broadcast %7 : vector<2x1x8xf32> to vector<2x8x8xf32>
    %45 = arith.addf %43, %44 : vector<2x8x8xf32>
    %cst_23 = arith.constant dense<0xFF800000> : vector<2x8xf32>
    %46 = vector.multi_reduction <maximumf>, %45, %cst_23 [2] : vector<2x8x8xf32> to vector<2x8xf32>
    %47 = vector.shape_cast %46 : vector<2x8xf32> to vector<2x8x1xf32>
    %48 = vector.broadcast %47 : vector<2x8x1xf32> to vector<2x8x8xf32>
    %49 = arith.subf %45, %48 : vector<2x8x8xf32>
    %50 = math.exp %49 : vector<2x8x8xf32>
    %cst_24 = arith.constant dense<0.000000e+00> : vector<2x8xf32>
    %51 = vector.multi_reduction <add>, %50, %cst_24 [2] : vector<2x8x8xf32> to vector<2x8xf32>
    %52 = vector.shape_cast %51 : vector<2x8xf32> to vector<2x8x1xf32>
    %53 = tpu.reciprocal %52 {approx = true} : vector<2x8x1xf32> -> vector<2x8x1xf32>
    %54 = vector.broadcast %53 : vector<2x8x1xf32> to vector<2x8x8xf32>
    %55 = arith.mulf %50, %54 : vector<2x8x8xf32>
    %56 = arith.truncf %55 : vector<2x8x8xf32> to vector<2x8x8xbf16>
    "tpu.trace_start"() <{level = 10 : i32, message = "bqk,bkd->bqd"}> : () -> ()
    %cst_25 = arith.constant dense<0.000000e+00> : vector<2x8x4xf32>
    %57 = tpu.matmul %56, %40, %cst_25 {dimension_numbers = #tpu.dot_dimension_numbers<[2], [1], [1], [2], [0, 0, 0, 1, 1, 2], [0], [0]>} : vector<2x8x8xbf16>, vector<2x8x4xbf16>, vector<2x8x4xf32> -> vector<2x8x4xf32>
    "tpu.trace_stop"() : () -> ()
    %58 = arith.truncf %57 : vector<2x8x4xf32> to vector<2x8x4xbf16>
    %c0_26 = arith.constant 0 : index
    %c0_27 = arith.constant 0 : index
    %c4 = arith.constant 4 : index
    %59 = vector.load %arg15[%c0_26, %c0_27, %c4] : memref<2x8x32xbf16, #tpu.memory_space<vmem>>, vector<2x8x4xbf16>
    tpu.vector_store %arg15[%c0_26, %c0_27, %c4], %58 {strides = array<i32>} : memref<2x8x32xbf16, #tpu.memory_space<vmem>>, vector<2x8x4xbf16>,
    %60 = vector.extract_strided_slice %15 {offsets = [0, 0, 8], sizes = [2, 8, 4], strides = [1, 1, 1]} : vector<2x8x96xbf16> to vector<2x8x4xbf16>
    %61 = vector.extract_strided_slice %15 {offsets = [0, 0, 40], sizes = [2, 8, 4], strides = [1, 1, 1]} : vector<2x8x96xbf16> to vector<2x8x4xbf16>
    %62 = vector.extract_strided_slice %15 {offsets = [0, 0, 72], sizes = [2, 8, 4], strides = [1, 1, 1]} : vector<2x8x96xbf16> to vector<2x8x4xbf16>
    "tpu.trace_start"() <{level = 10 : i32, message = "bqd,bkd->bqk"}> : () -> ()
    %cst_28 = arith.constant dense<0.000000e+00> : vector<2x8x8xf32>
    %63 = tpu.matmul %60, %61, %cst_28 {dimension_numbers = #tpu.dot_dimension_numbers<[2], [2], [1], [1], [0, 0, 0, 1, 1, 1], [0], [0]>} : vector<2x8x4xbf16>, vector<2x8x4xbf16>, vector<2x8x8xf32> -> vector<2x8x8xf32>
    "tpu.trace_stop"() : () -> ()
    %cst_29 = arith.constant 5.000000e-01 : f32
    %64 = vector.broadcast %cst_29 : f32 to vector<2x8x8xf32>
    %65 = arith.mulf %63, %64 : vector<2x8x8xf32>
    %66 = vector.broadcast %7 : vector<2x1x8xf32> to vector<2x8x8xf32>
    %67 = arith.addf %65, %66 : vector<2x8x8xf32>
    %cst_30 = arith.constant dense<0xFF800000> : vector<2x8xf32>
    %68 = vector.multi_reduction <maximumf>, %67, %cst_30 [2] : vector<2x8x8xf32> to vector<2x8xf32>
    %69 = vector.shape_cast %68 : vector<2x8xf32> to vector<2x8x1xf32>
    %70 = vector.broadcast %69 : vector<2x8x1xf32> to vector<2x8x8xf32>
    %71 = arith.subf %67, %70 : vector<2x8x8xf32>
    %72 = math.exp %71 : vector<2x8x8xf32>
    %cst_31 = arith.constant dense<0.000000e+00> : vector<2x8xf32>
    %73 = vector.multi_reduction <add>, %72, %cst_31 [2] : vector<2x8x8xf32> to vector<2x8xf32>
    %74 = vector.shape_cast %73 : vector<2x8xf32> to vector<2x8x1xf32>
    %75 = tpu.reciprocal %74 {approx = true} : vector<2x8x1xf32> -> vector<2x8x1xf32>
    %76 = vector.broadcast %75 : vector<2x8x1xf32> to vector<2x8x8xf32>
    %77 = arith.mulf %72, %76 : vector<2x8x8xf32>
    %78 = arith.truncf %77 : vector<2x8x8xf32> to vector<2x8x8xbf16>
    "tpu.trace_start"() <{level = 10 : i32, message = "bqk,bkd->bqd"}> : () -> ()
    %cst_32 = arith.constant dense<0.000000e+00> : vector<2x8x4xf32>
    %79 = tpu.matmul %78, %62, %cst_32 {dimension_numbers = #tpu.dot_dimension_numbers<[2], [1], [1], [2], [0, 0, 0, 1, 1, 2], [0], [0]>} : vector<2x8x8xbf16>, vector<2x8x4xbf16>, vector<2x8x4xf32> -> vector<2x8x4xf32>
    "tpu.trace_stop"() : () -> ()
    %80 = arith.truncf %79 : vector<2x8x4xf32> to vector<2x8x4xbf16>
    %c0_33 = arith.constant 0 : index
    %c0_34 = arith.constant 0 : index
    %c8 = arith.constant 8 : index
    %81 = vector.load %arg15[%c0_33, %c0_34, %c8] : memref<2x8x32xbf16, #tpu.memory_space<vmem>>, vector<2x8x4xbf16>
    tpu.vector_store %arg15[%c0_33, %c0_34, %c8], %80 {strides = array<i32>} : memref<2x8x32xbf16, #tpu.memory_space<vmem>>, vector<2x8x4xbf16>,
    %82 = vector.extract_strided_slice %15 {offsets = [0, 0, 12], sizes = [2, 8, 4], strides = [1, 1, 1]} : vector<2x8x96xbf16> to vector<2x8x4xbf16>
    %83 = vector.extract_strided_slice %15 {offsets = [0, 0, 44], sizes = [2, 8, 4], strides = [1, 1, 1]} : vector<2x8x96xbf16> to vector<2x8x4xbf16>
    %84 = vector.extract_strided_slice %15 {offsets = [0, 0, 76], sizes = [2, 8, 4], strides = [1, 1, 1]} : vector<2x8x96xbf16> to vector<2x8x4xbf16>
    "tpu.trace_start"() <{level = 10 : i32, message = "bqd,bkd->bqk"}> : () -> ()
    %cst_35 = arith.constant dense<0.000000e+00> : vector<2x8x8xf32>
    %85 = tpu.matmul %82, %83, %cst_35 {dimension_numbers = #tpu.dot_dimension_numbers<[2], [2], [1], [1], [0, 0, 0, 1, 1, 1], [0], [0]>} : vector<2x8x4xbf16>, vector<2x8x4xbf16>, vector<2x8x8xf32> -> vector<2x8x8xf32>
    "tpu.trace_stop"() : () -> ()
    %cst_36 = arith.constant 5.000000e-01 : f32
    %86 = vector.broadcast %cst_36 : f32 to vector<2x8x8xf32>
    %87 = arith.mulf %85, %86 : vector<2x8x8xf32>
    %88 = vector.broadcast %7 : vector<2x1x8xf32> to vector<2x8x8xf32>
    %89 = arith.addf %87, %88 : vector<2x8x8xf32>
    %cst_37 = arith.constant dense<0xFF800000> : vector<2x8xf32>
    %90 = vector.multi_reduction <maximumf>, %89, %cst_37 [2] : vector<2x8x8xf32> to vector<2x8xf32>
    %91 = vector.shape_cast %90 : vector<2x8xf32> to vector<2x8x1xf32>
    %92 = vector.broadcast %91 : vector<2x8x1xf32> to vector<2x8x8xf32>
    %93 = arith.subf %89, %92 : vector<2x8x8xf32>
    %94 = math.exp %93 : vector<2x8x8xf32>
    %cst_38 = arith.constant dense<0.000000e+00> : vector<2x8xf32>
    %95 = vector.multi_reduction <add>, %94, %cst_38 [2] : vector<2x8x8xf32> to vector<2x8xf32>
    %96 = vector.shape_cast %95 : vector<2x8xf32> to vector<2x8x1xf32>
    %97 = tpu.reciprocal %96 {approx = true} : vector<2x8x1xf32> -> vector<2x8x1xf32>
    %98 = vector.broadcast %97 : vector<2x8x1xf32> to vector<2x8x8xf32>
    %99 = arith.mulf %94, %98 : vector<2x8x8xf32>
    %100 = arith.truncf %99 : vector<2x8x8xf32> to vector<2x8x8xbf16>
    "tpu.trace_start"() <{level = 10 : i32, message = "bqk,bkd->bqd"}> : () -> ()
    %cst_39 = arith.constant dense<0.000000e+00> : vector<2x8x4xf32>
    %101 = tpu.matmul %100, %84, %cst_39 {dimension_numbers = #tpu.dot_dimension_numbers<[2], [1], [1], [2], [0, 0, 0, 1, 1, 2], [0], [0]>} : vector<2x8x8xbf16>, vector<2x8x4xbf16>, vector<2x8x4xf32> -> vector<2x8x4xf32>
    "tpu.trace_stop"() : () -> ()
    %102 = arith.truncf %101 : vector<2x8x4xf32> to vector<2x8x4xbf16>
    %c0_40 = arith.constant 0 : index
    %c0_41 = arith.constant 0 : index
    %c12 = arith.constant 12 : index
    %103 = vector.load %arg15[%c0_40, %c0_41, %c12] : memref<2x8x32xbf16, #tpu.memory_space<vmem>>, vector<2x8x4xbf16>
    tpu.vector_store %arg15[%c0_40, %c0_41, %c12], %102 {strides = array<i32>} : memref<2x8x32xbf16, #tpu.memory_space<vmem>>, vector<2x8x4xbf16>,
    %104 = vector.extract_strided_slice %15 {offsets = [0, 0, 16], sizes = [2, 8, 4], strides = [1, 1, 1]} : vector<2x8x96xbf16> to vector<2x8x4xbf16>
    %105 = vector.extract_strided_slice %15 {offsets = [0, 0, 48], sizes = [2, 8, 4], strides = [1, 1, 1]} : vector<2x8x96xbf16> to vector<2x8x4xbf16>
    %106 = vector.extract_strided_slice %15 {offsets = [0, 0, 80], sizes = [2, 8, 4], strides = [1, 1, 1]} : vector<2x8x96xbf16> to vector<2x8x4xbf16>
    "tpu.trace_start"() <{level = 10 : i32, message = "bqd,bkd->bqk"}> : () -> ()
    %cst_42 = arith.constant dense<0.000000e+00> : vector<2x8x8xf32>
    %107 = tpu.matmul %104, %105, %cst_42 {dimension_numbers = #tpu.dot_dimension_numbers<[2], [2], [1], [1], [0, 0, 0, 1, 1, 1], [0], [0]>} : vector<2x8x4xbf16>, vector<2x8x4xbf16>, vector<2x8x8xf32> -> vector<2x8x8xf32>
    "tpu.trace_stop"() : () -> ()
    %cst_43 = arith.constant 5.000000e-01 : f32
    %108 = vector.broadcast %cst_43 : f32 to vector<2x8x8xf32>
    %109 = arith.mulf %107, %108 : vector<2x8x8xf32>
    %110 = vector.broadcast %7 : vector<2x1x8xf32> to vector<2x8x8xf32>
    %111 = arith.addf %109, %110 : vector<2x8x8xf32>
    %cst_44 = arith.constant dense<0xFF800000> : vector<2x8xf32>
    %112 = vector.multi_reduction <maximumf>, %111, %cst_44 [2] : vector<2x8x8xf32> to vector<2x8xf32>
    %113 = vector.shape_cast %112 : vector<2x8xf32> to vector<2x8x1xf32>
    %114 = vector.broadcast %113 : vector<2x8x1xf32> to vector<2x8x8xf32>
    %115 = arith.subf %111, %114 : vector<2x8x8xf32>
    %116 = math.exp %115 : vector<2x8x8xf32>
    %cst_45 = arith.constant dense<0.000000e+00> : vector<2x8xf32>
    %117 = vector.multi_reduction <add>, %116, %cst_45 [2] : vector<2x8x8xf32> to vector<2x8xf32>
    %118 = vector.shape_cast %117 : vector<2x8xf32> to vector<2x8x1xf32>
    %119 = tpu.reciprocal %118 {approx = true} : vector<2x8x1xf32> -> vector<2x8x1xf32>
    %120 = vector.broadcast %119 : vector<2x8x1xf32> to vector<2x8x8xf32>
    %121 = arith.mulf %116, %120 : vector<2x8x8xf32>
    %122 = arith.truncf %121 : vector<2x8x8xf32> to vector<2x8x8xbf16>
    "tpu.trace_start"() <{level = 10 : i32, message = "bqk,bkd->bqd"}> : () -> ()
    %cst_46 = arith.constant dense<0.000000e+00> : vector<2x8x4xf32>
    %123 = tpu.matmul %122, %106, %cst_46 {dimension_numbers = #tpu.dot_dimension_numbers<[2], [1], [1], [2], [0, 0, 0, 1, 1, 2], [0], [0]>} : vector<2x8x8xbf16>, vector<2x8x4xbf16>, vector<2x8x4xf32> -> vector<2x8x4xf32>
    "tpu.trace_stop"() : () -> ()
    %124 = arith.truncf %123 : vector<2x8x4xf32> to vector<2x8x4xbf16>
    %c0_47 = arith.constant 0 : index
    %c0_48 = arith.constant 0 : index
    %c16 = arith.constant 16 : index
    %125 = vector.load %arg15[%c0_47, %c0_48, %c16] : memref<2x8x32xbf16, #tpu.memory_space<vmem>>, vector<2x8x4xbf16>
    tpu.vector_store %arg15[%c0_47, %c0_48, %c16], %124 {strides = array<i32>} : memref<2x8x32xbf16, #tpu.memory_space<vmem>>, vector<2x8x4xbf16>,
    %126 = vector.extract_strided_slice %15 {offsets = [0, 0, 20], sizes = [2, 8, 4], strides = [1, 1, 1]} : vector<2x8x96xbf16> to vector<2x8x4xbf16>
    %127 = vector.extract_strided_slice %15 {offsets = [0, 0, 52], sizes = [2, 8, 4], strides = [1, 1, 1]} : vector<2x8x96xbf16> to vector<2x8x4xbf16>
    %128 = vector.extract_strided_slice %15 {offsets = [0, 0, 84], sizes = [2, 8, 4], strides = [1, 1, 1]} : vector<2x8x96xbf16> to vector<2x8x4xbf16>
    "tpu.trace_start"() <{level = 10 : i32, message = "bqd,bkd->bqk"}> : () -> ()
    %cst_49 = arith.constant dense<0.000000e+00> : vector<2x8x8xf32>
    %129 = tpu.matmul %126, %127, %cst_49 {dimension_numbers = #tpu.dot_dimension_numbers<[2], [2], [1], [1], [0, 0, 0, 1, 1, 1], [0], [0]>} : vector<2x8x4xbf16>, vector<2x8x4xbf16>, vector<2x8x8xf32> -> vector<2x8x8xf32>
    "tpu.trace_stop"() : () -> ()
    %cst_50 = arith.constant 5.000000e-01 : f32
    %130 = vector.broadcast %cst_50 : f32 to vector<2x8x8xf32>
    %131 = arith.mulf %129, %130 : vector<2x8x8xf32>
    %132 = vector.broadcast %7 : vector<2x1x8xf32> to vector<2x8x8xf32>
    %133 = arith.addf %131, %132 : vector<2x8x8xf32>
    %cst_51 = arith.constant dense<0xFF800000> : vector<2x8xf32>
    %134 = vector.multi_reduction <maximumf>, %133, %cst_51 [2] : vector<2x8x8xf32> to vector<2x8xf32>
    %135 = vector.shape_cast %134 : vector<2x8xf32> to vector<2x8x1xf32>
    %136 = vector.broadcast %135 : vector<2x8x1xf32> to vector<2x8x8xf32>
    %137 = arith.subf %133, %136 : vector<2x8x8xf32>
    %138 = math.exp %137 : vector<2x8x8xf32>
    %cst_52 = arith.constant dense<0.000000e+00> : vector<2x8xf32>
    %139 = vector.multi_reduction <add>, %138, %cst_52 [2] : vector<2x8x8xf32> to vector<2x8xf32>
    %140 = vector.shape_cast %139 : vector<2x8xf32> to vector<2x8x1xf32>
    %141 = tpu.reciprocal %140 {approx = true} : vector<2x8x1xf32> -> vector<2x8x1xf32>
    %142 = vector.broadcast %141 : vector<2x8x1xf32> to vector<2x8x8xf32>
    %143 = arith.mulf %138, %142 : vector<2x8x8xf32>
    %144 = arith.truncf %143 : vector<2x8x8xf32> to vector<2x8x8xbf16>
    "tpu.trace_start"() <{level = 10 : i32, message = "bqk,bkd->bqd"}> : () -> ()
    %cst_53 = arith.constant dense<0.000000e+00> : vector<2x8x4xf32>
    %145 = tpu.matmul %144, %128, %cst_53 {dimension_numbers = #tpu.dot_dimension_numbers<[2], [1], [1], [2], [0, 0, 0, 1, 1, 2], [0], [0]>} : vector<2x8x8xbf16>, vector<2x8x4xbf16>, vector<2x8x4xf32> -> vector<2x8x4xf32>
    "tpu.trace_stop"() : () -> ()
    %146 = arith.truncf %145 : vector<2x8x4xf32> to vector<2x8x4xbf16>
    %c0_54 = arith.constant 0 : index
    %c0_55 = arith.constant 0 : index
    %c20 = arith.constant 20 : index
    %147 = vector.load %arg15[%c0_54, %c0_55, %c20] : memref<2x8x32xbf16, #tpu.memory_space<vmem>>, vector<2x8x4xbf16>
    tpu.vector_store %arg15[%c0_54, %c0_55, %c20], %146 {strides = array<i32>} : memref<2x8x32xbf16, #tpu.memory_space<vmem>>, vector<2x8x4xbf16>,
    %148 = vector.extract_strided_slice %15 {offsets = [0, 0, 24], sizes = [2, 8, 4], strides = [1, 1, 1]} : vector<2x8x96xbf16> to vector<2x8x4xbf16>
    %149 = vector.extract_strided_slice %15 {offsets = [0, 0, 56], sizes = [2, 8, 4], strides = [1, 1, 1]} : vector<2x8x96xbf16> to vector<2x8x4xbf16>
    %150 = vector.extract_strided_slice %15 {offsets = [0, 0, 88], sizes = [2, 8, 4], strides = [1, 1, 1]} : vector<2x8x96xbf16> to vector<2x8x4xbf16>
    "tpu.trace_start"() <{level = 10 : i32, message = "bqd,bkd->bqk"}> : () -> ()
    %cst_56 = arith.constant dense<0.000000e+00> : vector<2x8x8xf32>
    %151 = tpu.matmul %148, %149, %cst_56 {dimension_numbers = #tpu.dot_dimension_numbers<[2], [2], [1], [1], [0, 0, 0, 1, 1, 1], [0], [0]>} : vector<2x8x4xbf16>, vector<2x8x4xbf16>, vector<2x8x8xf32> -> vector<2x8x8xf32>
    "tpu.trace_stop"() : () -> ()
    %cst_57 = arith.constant 5.000000e-01 : f32
    %152 = vector.broadcast %cst_57 : f32 to vector<2x8x8xf32>
    %153 = arith.mulf %151, %152 : vector<2x8x8xf32>
    %154 = vector.broadcast %7 : vector<2x1x8xf32> to vector<2x8x8xf32>
    %155 = arith.addf %153, %154 : vector<2x8x8xf32>
    %cst_58 = arith.constant dense<0xFF800000> : vector<2x8xf32>
    %156 = vector.multi_reduction <maximumf>, %155, %cst_58 [2] : vector<2x8x8xf32> to vector<2x8xf32>
    %157 = vector.shape_cast %156 : vector<2x8xf32> to vector<2x8x1xf32>
    %158 = vector.broadcast %157 : vector<2x8x1xf32> to vector<2x8x8xf32>
    %159 = arith.subf %155, %158 : vector<2x8x8xf32>
    %160 = math.exp %159 : vector<2x8x8xf32>
    %cst_59 = arith.constant dense<0.000000e+00> : vector<2x8xf32>
    %161 = vector.multi_reduction <add>, %160, %cst_59 [2] : vector<2x8x8xf32> to vector<2x8xf32>
    %162 = vector.shape_cast %161 : vector<2x8xf32> to vector<2x8x1xf32>
    %163 = tpu.reciprocal %162 {approx = true} : vector<2x8x1xf32> -> vector<2x8x1xf32>
    %164 = vector.broadcast %163 : vector<2x8x1xf32> to vector<2x8x8xf32>
    %165 = arith.mulf %160, %164 : vector<2x8x8xf32>
    %166 = arith.truncf %165 : vector<2x8x8xf32> to vector<2x8x8xbf16>
    "tpu.trace_start"() <{level = 10 : i32, message = "bqk,bkd->bqd"}> : () -> ()
    %cst_60 = arith.constant dense<0.000000e+00> : vector<2x8x4xf32>
    %167 = tpu.matmul %166, %150, %cst_60 {dimension_numbers = #tpu.dot_dimension_numbers<[2], [1], [1], [2], [0, 0, 0, 1, 1, 2], [0], [0]>} : vector<2x8x8xbf16>, vector<2x8x4xbf16>, vector<2x8x4xf32> -> vector<2x8x4xf32>
    "tpu.trace_stop"() : () -> ()
    %168 = arith.truncf %167 : vector<2x8x4xf32> to vector<2x8x4xbf16>
    %c0_61 = arith.constant 0 : index
    %c0_62 = arith.constant 0 : index
    %c24 = arith.constant 24 : index
    %169 = vector.load %arg15[%c0_61, %c0_62, %c24] : memref<2x8x32xbf16, #tpu.memory_space<vmem>>, vector<2x8x4xbf16>
    tpu.vector_store %arg15[%c0_61, %c0_62, %c24], %168 {strides = array<i32>} : memref<2x8x32xbf16, #tpu.memory_space<vmem>>, vector<2x8x4xbf16>,
    %170 = vector.extract_strided_slice %15 {offsets = [0, 0, 28], sizes = [2, 8, 4], strides = [1, 1, 1]} : vector<2x8x96xbf16> to vector<2x8x4xbf16>
    %171 = vector.extract_strided_slice %15 {offsets = [0, 0, 60], sizes = [2, 8, 4], strides = [1, 1, 1]} : vector<2x8x96xbf16> to vector<2x8x4xbf16>
    %172 = vector.extract_strided_slice %15 {offsets = [0, 0, 92], sizes = [2, 8, 4], strides = [1, 1, 1]} : vector<2x8x96xbf16> to vector<2x8x4xbf16>
    "tpu.trace_start"() <{level = 10 : i32, message = "bqd,bkd->bqk"}> : () -> ()
    %cst_63 = arith.constant dense<0.000000e+00> : vector<2x8x8xf32>
    %173 = tpu.matmul %170, %171, %cst_63 {dimension_numbers = #tpu.dot_dimension_numbers<[2], [2], [1], [1], [0, 0, 0, 1, 1, 1], [0], [0]>} : vector<2x8x4xbf16>, vector<2x8x4xbf16>, vector<2x8x8xf32> -> vector<2x8x8xf32>
    "tpu.trace_stop"() : () -> ()
    %cst_64 = arith.constant 5.000000e-01 : f32
    %174 = vector.broadcast %cst_64 : f32 to vector<2x8x8xf32>
    %175 = arith.mulf %173, %174 : vector<2x8x8xf32>
    %176 = vector.broadcast %7 : vector<2x1x8xf32> to vector<2x8x8xf32>
    %177 = arith.addf %175, %176 : vector<2x8x8xf32>
    %cst_65 = arith.constant dense<0xFF800000> : vector<2x8xf32>
    %178 = vector.multi_reduction <maximumf>, %177, %cst_65 [2] : vector<2x8x8xf32> to vector<2x8xf32>
    %179 = vector.shape_cast %178 : vector<2x8xf32> to vector<2x8x1xf32>
    %180 = vector.broadcast %179 : vector<2x8x1xf32> to vector<2x8x8xf32>
    %181 = arith.subf %177, %180 : vector<2x8x8xf32>
    %182 = math.exp %181 : vector<2x8x8xf32>
    %cst_66 = arith.constant dense<0.000000e+00> : vector<2x8xf32>
    %183 = vector.multi_reduction <add>, %182, %cst_66 [2] : vector<2x8x8xf32> to vector<2x8xf32>
    %184 = vector.shape_cast %183 : vector<2x8xf32> to vector<2x8x1xf32>
    %185 = tpu.reciprocal %184 {approx = true} : vector<2x8x1xf32> -> vector<2x8x1xf32>
    %186 = vector.broadcast %185 : vector<2x8x1xf32> to vector<2x8x8xf32>
    %187 = arith.mulf %182, %186 : vector<2x8x8xf32>
    %188 = arith.truncf %187 : vector<2x8x8xf32> to vector<2x8x8xbf16>
    "tpu.trace_start"() <{level = 10 : i32, message = "bqk,bkd->bqd"}> : () -> ()
    %cst_67 = arith.constant dense<0.000000e+00> : vector<2x8x4xf32>
    %189 = tpu.matmul %188, %172, %cst_67 {dimension_numbers = #tpu.dot_dimension_numbers<[2], [1], [1], [2], [0, 0, 0, 1, 1, 2], [0], [0]>} : vector<2x8x8xbf16>, vector<2x8x4xbf16>, vector<2x8x4xf32> -> vector<2x8x4xf32>
    "tpu.trace_stop"() : () -> ()
    %190 = arith.truncf %189 : vector<2x8x4xf32> to vector<2x8x4xbf16>
    %c0_68 = arith.constant 0 : index
    %c0_69 = arith.constant 0 : index
    %c28 = arith.constant 28 : index
    %191 = vector.load %arg15[%c0_68, %c0_69, %c28] : memref<2x8x32xbf16, #tpu.memory_space<vmem>>, vector<2x8x4xbf16>
    tpu.vector_store %arg15[%c0_68, %c0_69, %c28], %190 {strides = array<i32>} : memref<2x8x32xbf16, #tpu.memory_space<vmem>>, vector<2x8x4xbf16>,
    %c0_70 = arith.constant 0 : index
    %c0_71 = arith.constant 0 : index
    %c0_72 = arith.constant 0 : index
    %192 = vector.load %arg15[%c0_70, %c0_71, %c0_72] : memref<2x8x32xbf16, #tpu.memory_space<vmem>>, vector<2x8x32xbf16>
    %193 = vector.shape_cast %192 : vector<2x8x32xbf16> to vector<16x32xbf16>
    %c0_73 = arith.constant 0 : index
    %c0_74 = arith.constant 0 : index
    %194 = vector.load %arg5[%c0_73, %c0_74] : memref<32x32xbf16, #tpu.memory_space<vmem>>, vector<32x32xbf16>
    %cst_75 = arith.constant dense<0.000000e+00> : vector<16x32xf32>
    %195 = tpu.matmul %193, %194, %cst_75 {dimension_numbers = #tpu.dot_dimension_numbers<[1], [0], [0], [1], [0, 0, 1, 1], [], []>} : vector<16x32xbf16>, vector<32x32xbf16>, vector<16x32xf32> -> vector<16x32xf32>
    %196 = vector.extract_strided_slice %2 {offsets = [0, 0], sizes = [1, 32], strides = [1, 1]} : vector<10x32xf32> to vector<1x32xf32>
    %197 = vector.broadcast %196 : vector<1x32xf32> to vector<16x32xf32>
    %198 = arith.addf %195, %197 : vector<16x32xf32>
    %199 = vector.shape_cast %198 : vector<16x32xf32> to vector<2x8x32xf32>
    %200 = arith.addf %1, %199 : vector<2x8x32xf32>
    %201 = vector.extract_strided_slice %2 {offsets = [1, 0], sizes = [1, 32], strides = [1, 1]} : vector<10x32xf32> to vector<1x32xf32>
    %202 = vector.extract_strided_slice %2 {offsets = [2, 0], sizes = [1, 32], strides = [1, 1]} : vector<10x32xf32> to vector<1x32xf32>
    %cst_76 = arith.constant dense<0.000000e+00> : vector<2x8xf32>
    %203 = vector.multi_reduction <add>, %200, %cst_76 [2] : vector<2x8x32xf32> to vector<2x8xf32>
    %204 = vector.shape_cast %203 : vector<2x8xf32> to vector<2x8x1xf32>
    %cst_77 = arith.constant 3.200000e+01 : f32
    %205 = vector.broadcast %cst_77 : f32 to vector<2x8x1xf32>
    %206 = arith.divf %204, %205 : vector<2x8x1xf32>
    %207 = vector.broadcast %206 : vector<2x8x1xf32> to vector<2x8x32xf32>
    %208 = arith.subf %200, %207 : vector<2x8x32xf32>
    %209 = arith.mulf %208, %208 : vector<2x8x32xf32>
    %cst_78 = arith.constant dense<0.000000e+00> : vector<2x8xf32>
    %210 = vector.multi_reduction <add>, %209, %cst_78 [2] : vector<2x8x32xf32> to vector<2x8xf32>
    %211 = vector.shape_cast %210 : vector<2x8xf32> to vector<2x8x1xf32>
    %cst_79 = arith.constant 3.200000e+01 : f32
    %212 = vector.broadcast %cst_79 : f32 to vector<2x8x1xf32>
    %213 = arith.divf %211, %212 : vector<2x8x1xf32>
    %214 = vector.broadcast %206 : vector<2x8x1xf32> to vector<2x8x32xf32>
    %215 = arith.subf %200, %214 : vector<2x8x32xf32>
    %cst_80 = arith.constant 9.99999974E-6 : f32
    %216 = vector.broadcast %cst_80 : f32 to vector<2x8x1xf32>
    %217 = arith.addf %213, %216 : vector<2x8x1xf32>
    %218 = math.rsqrt %217 : vector<2x8x1xf32>
    %219 = vector.broadcast %218 : vector<2x8x1xf32> to vector<2x8x32xf32>
    %220 = arith.mulf %215, %219 : vector<2x8x32xf32>
    %221 = vector.shape_cast %201 : vector<1x32xf32> to vector<1x1x32xf32>
    %222 = vector.broadcast %221 : vector<1x1x32xf32> to vector<2x8x32xf32>
    %223 = arith.mulf %220, %222 : vector<2x8x32xf32>
    %224 = vector.shape_cast %202 : vector<1x32xf32> to vector<1x1x32xf32>
    %225 = vector.broadcast %224 : vector<1x1x32xf32> to vector<2x8x32xf32>
    %226 = arith.addf %223, %225 : vector<2x8x32xf32>
    %227 = arith.truncf %226 : vector<2x8x32xf32> to vector<2x8x32xbf16>
    %228 = vector.shape_cast %227 : vector<2x8x32xbf16> to vector<16x32xbf16>
    %c0_81 = arith.constant 0 : index
    %c0_82 = arith.constant 0 : index
    %229 = vector.load %arg6[%c0_81, %c0_82] : memref<32x64xbf16, #tpu.memory_space<vmem>>, vector<32x64xbf16>
    %cst_83 = arith.constant dense<0.000000e+00> : vector<16x64xf32>
    %230 = tpu.matmul %228, %229, %cst_83 {dimension_numbers = #tpu.dot_dimension_numbers<[1], [0], [0], [1], [0, 0, 1, 1], [], []>} : vector<16x32xbf16>, vector<32x64xbf16>, vector<16x64xf32> -> vector<16x64xf32>
    %c0_84 = arith.constant 0 : index
    %c0_85 = arith.constant 0 : index
    %231 = vector.load %arg7[%c0_84, %c0_85] : memref<1x64xf32, #tpu.memory_space<vmem>>, vector<1x64xf32>
    %232 = vector.broadcast %231 : vector<1x64xf32> to vector<16x64xf32>
    %233 = arith.addf %230, %232 : vector<16x64xf32>
    %234 = arith.mulf %233, %233 : vector<16x64xf32>
    %235 = arith.mulf %233, %234 : vector<16x64xf32>
    %cst_86 = arith.constant 4.471500e-02 : f32
    %236 = vector.broadcast %cst_86 : f32 to vector<16x64xf32>
    %237 = arith.mulf %236, %235 : vector<16x64xf32>
    %238 = arith.addf %233, %237 : vector<16x64xf32>
    %cst_87 = arith.constant 0.797884583 : f32
    %239 = vector.broadcast %cst_87 : f32 to vector<16x64xf32>
    %240 = arith.mulf %239, %238 : vector<16x64xf32>
    %241 = math.tanh %240 : vector<16x64xf32>
    %cst_88 = arith.constant 1.000000e+00 : f32
    %242 = vector.broadcast %cst_88 : f32 to vector<16x64xf32>
    %243 = arith.addf %242, %241 : vector<16x64xf32>
    %cst_89 = arith.constant 5.000000e-01 : f32
    %244 = vector.broadcast %cst_89 : f32 to vector<16x64xf32>
    %245 = arith.mulf %244, %243 : vector<16x64xf32>
    %246 = arith.mulf %233, %245 : vector<16x64xf32>
    %247 = arith.truncf %246 : vector<16x64xf32> to vector<16x64xbf16>
    %c0_90 = arith.constant 0 : index
    %c0_91 = arith.constant 0 : index
    %248 = vector.load %arg8[%c0_90, %c0_91] : memref<64x32xbf16, #tpu.memory_space<vmem>>, vector<64x32xbf16>
    %cst_92 = arith.constant dense<0.000000e+00> : vector<16x32xf32>
    %249 = tpu.matmul %247, %248, %cst_92 {dimension_numbers = #tpu.dot_dimension_numbers<[1], [0], [0], [1], [0, 0, 1, 1], [], []>} : vector<16x64xbf16>, vector<64x32xbf16>, vector<16x32xf32> -> vector<16x32xf32>
    %250 = vector.extract_strided_slice %2 {offsets = [3, 0], sizes = [1, 32], strides = [1, 1]} : vector<10x32xf32> to vector<1x32xf32>
    %251 = vector.broadcast %250 : vector<1x32xf32> to vector<16x32xf32>
    %252 = arith.addf %249, %251 : vector<16x32xf32>
    %253 = vector.shape_cast %252 : vector<16x32xf32> to vector<2x8x32xf32>
    %254 = arith.addf %226, %253 : vector<2x8x32xf32>
    %255 = vector.extract_strided_slice %2 {offsets = [4, 0], sizes = [1, 32], strides = [1, 1]} : vector<10x32xf32> to vector<1x32xf32>
    %256 = vector.extract_strided_slice %2 {offsets = [5, 0], sizes = [1, 32], strides = [1, 1]} : vector<10x32xf32> to vector<1x32xf32>
    %cst_93 = arith.constant dense<0.000000e+00> : vector<2x8xf32>
    %257 = vector.multi_reduction <add>, %254, %cst_93 [2] : vector<2x8x32xf32> to vector<2x8xf32>
    %258 = vector.shape_cast %257 : vector<2x8xf32> to vector<2x8x1xf32>
    %cst_94 = arith.constant 3.200000e+01 : f32
    %259 = vector.broadcast %cst_94 : f32 to vector<2x8x1xf32>
    %260 = arith.divf %258, %259 : vector<2x8x1xf32>
    %261 = vector.broadcast %260 : vector<2x8x1xf32> to vector<2x8x32xf32>
    %262 = arith.subf %254, %261 : vector<2x8x32xf32>
    %263 = arith.mulf %262, %262 : vector<2x8x32xf32>
    %cst_95 = arith.constant dense<0.000000e+00> : vector<2x8xf32>
    %264 = vector.multi_reduction <add>, %263, %cst_95 [2] : vector<2x8x32xf32> to vector<2x8xf32>
    %265 = vector.shape_cast %264 : vector<2x8xf32> to vector<2x8x1xf32>
    %cst_96 = arith.constant 3.200000e+01 : f32
    %266 = vector.broadcast %cst_96 : f32 to vector<2x8x1xf32>
    %267 = arith.divf %265, %266 : vector<2x8x1xf32>
    %268 = vector.broadcast %260 : vector<2x8x1xf32> to vector<2x8x32xf32>
    %269 = arith.subf %254, %268 : vector<2x8x32xf32>
    %cst_97 = arith.constant 9.99999974E-6 : f32
    %270 = vector.broadcast %cst_97 : f32 to vector<2x8x1xf32>
    %271 = arith.addf %267, %270 : vector<2x8x1xf32>
    %272 = math.rsqrt %271 : vector<2x8x1xf32>
    %273 = vector.broadcast %272 : vector<2x8x1xf32> to vector<2x8x32xf32>
    %274 = arith.mulf %269, %273 : vector<2x8x32xf32>
    %275 = vector.shape_cast %255 : vector<1x32xf32> to vector<1x1x32xf32>
    %276 = vector.broadcast %275 : vector<1x1x32xf32> to vector<2x8x32xf32>
    %277 = arith.mulf %274, %276 : vector<2x8x32xf32>
    %278 = vector.shape_cast %256 : vector<1x32xf32> to vector<1x1x32xf32>
    %279 = vector.broadcast %278 : vector<1x1x32xf32> to vector<2x8x32xf32>
    %280 = arith.addf %277, %279 : vector<2x8x32xf32>
    %281 = vector.extract_strided_slice %280 {offsets = [0, 0, 0], sizes = [2, 1, 32], strides = [1, 1, 1]} : vector<2x8x32xf32> to vector<2x1x32xf32>
    %282 = vector.shape_cast %281 : vector<2x1x32xf32> to vector<2x32xf32>
    %283 = arith.truncf %282 : vector<2x32xf32> to vector<2x32xbf16>
    %c0_98 = arith.constant 0 : index
    %c0_99 = arith.constant 0 : index
    %284 = vector.load %arg9[%c0_98, %c0_99] : memref<32x32xbf16, #tpu.memory_space<vmem>>, vector<32x32xbf16>
    %cst_100 = arith.constant dense<0.000000e+00> : vector<2x32xf32>
    %285 = tpu.matmul %283, %284, %cst_100 {dimension_numbers = #tpu.dot_dimension_numbers<[1], [0], [0], [1], [0, 0, 1, 1], [], []>} : vector<2x32xbf16>, vector<32x32xbf16>, vector<2x32xf32> -> vector<2x32xf32>
    %286 = vector.extract_strided_slice %2 {offsets = [6, 0], sizes = [1, 32], strides = [1, 1]} : vector<10x32xf32> to vector<1x32xf32>
    %287 = vector.broadcast %286 : vector<1x32xf32> to vector<2x32xf32>
    %288 = arith.addf %285, %287 : vector<2x32xf32>
    %289 = arith.truncf %288 : vector<2x32xf32> to vector<2x32xbf16>
    %c0_101 = arith.constant 0 : index
    %c0_102 = arith.constant 0 : index
    %290 = vector.load %arg10[%c0_101, %c0_102] : memref<32x32xbf16, #tpu.memory_space<vmem>>, vector<32x32xbf16>
    %cst_103 = arith.constant dense<0.000000e+00> : vector<2x32xf32>
    %291 = tpu.matmul %289, %290, %cst_103 {dimension_numbers = #tpu.dot_dimension_numbers<[1], [0], [0], [1], [0, 0, 1, 1], [], []>} : vector<2x32xbf16>, vector<32x32xbf16>, vector<2x32xf32> -> vector<2x32xf32>
    %292 = vector.extract_strided_slice %2 {offsets = [7, 0], sizes = [1, 32], strides = [1, 1]} : vector<10x32xf32> to vector<1x32xf32>
    %293 = vector.broadcast %292 : vector<1x32xf32> to vector<2x32xf32>
    %294 = arith.addf %291, %293 : vector<2x32xf32>
    %295 = arith.addf %294, %282 : vector<2x32xf32>
    %296 = vector.extract_strided_slice %2 {offsets = [8, 0], sizes = [1, 32], strides = [1, 1]} : vector<10x32xf32> to vector<1x32xf32>
    %297 = vector.extract_strided_slice %2 {offsets = [9, 0], sizes = [1, 32], strides = [1, 1]} : vector<10x32xf32> to vector<1x32xf32>
    %cst_104 = arith.constant dense<0.000000e+00> : vector<2xf32>
    %298 = vector.multi_reduction <add>, %295, %cst_104 [1] : vector<2x32xf32> to vector<2xf32>
    %299 = vector.shape_cast %298 : vector<2xf32> to vector<2x1xf32>
    %cst_105 = arith.constant 3.200000e+01 : f32
    %300 = vector.broadcast %cst_105 : f32 to vector<2x1xf32>
    %301 = arith.divf %299, %300 : vector<2x1xf32>
    %302 = vector.broadcast %301 : vector<2x1xf32> to vector<2x32xf32>
    %303 = arith.subf %295, %302 : vector<2x32xf32>
    %304 = arith.mulf %303, %303 : vector<2x32xf32>
    %cst_106 = arith.constant dense<0.000000e+00> : vector<2xf32>
    %305 = vector.multi_reduction <add>, %304, %cst_106 [1] : vector<2x32xf32> to vector<2xf32>
    %306 = vector.shape_cast %305 : vector<2xf32> to vector<2x1xf32>
    %cst_107 = arith.constant 3.200000e+01 : f32
    %307 = vector.broadcast %cst_107 : f32 to vector<2x1xf32>
    %308 = arith.divf %306, %307 : vector<2x1xf32>
    %309 = vector.broadcast %301 : vector<2x1xf32> to vector<2x32xf32>
    %310 = arith.subf %295, %309 : vector<2x32xf32>
    %cst_108 = arith.constant 9.99999974E-6 : f32
    %311 = vector.broadcast %cst_108 : f32 to vector<2x1xf32>
    %312 = arith.addf %308, %311 : vector<2x1xf32>
    %313 = math.rsqrt %312 : vector<2x1xf32>
    %314 = vector.broadcast %313 : vector<2x1xf32> to vector<2x32xf32>
    %315 = arith.mulf %310, %314 : vector<2x32xf32>
    %316 = vector.broadcast %296 : vector<1x32xf32> to vector<2x32xf32>
    %317 = arith.mulf %315, %316 : vector<2x32xf32>
    %318 = vector.broadcast %297 : vector<1x32xf32> to vector<2x32xf32>
    %319 = arith.addf %317, %318 : vector<2x32xf32>
    %320 = arith.truncf %319 : vector<2x32xf32> to vector<2x32xbf16>
    %c0_109 = arith.constant 0 : index
    %c0_110 = arith.constant 0 : index
    %321 = vector.load %arg11[%c0_109, %c0_110] : memref<32x128xbf16, #tpu.memory_space<vmem>>, vector<32x128xbf16>
    %cst_111 = arith.constant dense<0.000000e+00> : vector<2x128xf32>
    %322 = tpu.matmul %320, %321, %cst_111 {dimension_numbers = #tpu.dot_dimension_numbers<[1], [0], [0], [1], [0, 0, 1, 1], [], []>} : vector<2x32xbf16>, vector<32x128xbf16>, vector<2x128xf32> -> vector<2x128xf32>
    %c0_112 = arith.constant 0 : index
    %c0_113 = arith.constant 0 : index
    %323 = vector.load %arg12[%c0_112, %c0_113] : memref<1x128xf32, #tpu.memory_space<vmem>>, vector<1x128xf32>
    %324 = vector.broadcast %323 : vector<1x128xf32> to vector<2x128xf32>
    %325 = arith.addf %322, %324 : vector<2x128xf32>
    %c0_114 = arith.constant 0 : index
    %c0_115 = arith.constant 0 : index
    %326 = vector.load %arg14[%c0_114, %c0_115] : memref<2x128xf32, #tpu.memory_space<vmem>>, vector<2x128xf32>
    tpu.vector_store %arg14[%c0_114, %c0_115], %325 {strides = array<i32>} : memref<2x128xf32, #tpu.memory_space<vmem>>, vector<2x128xf32>,
    return
  }
  func.func @transform_0(%arg0: i32) -> (i32, i32, i32) {
    %c0_i32 = arith.constant 0 : i32
    %c0_i32_0 = arith.constant 0 : i32
    %c0_i32_1 = arith.constant 0 : i32
    return %arg0, %c0_i32, %c0_i32_0 : i32, i32, i32
  }
  func.func @transform_1(%arg0: i32) -> (i32, i32, i32) {
    %c0_i32 = arith.constant 0 : i32
    %c0_i32_0 = arith.constant 0 : i32
    %c0_i32_1 = arith.constant 0 : i32
    return %arg0, %c0_i32, %c0_i32_0 : i32, i32, i32
  }
  func.func @transform_2(%arg0: i32) -> (i32, i32) {
    %c0_i32 = arith.constant 0 : i32
    %c0_i32_0 = arith.constant 0 : i32
    %c0_i32_1 = arith.constant 0 : i32
    return %c0_i32, %c0_i32_0 : i32, i32
  }
  func.func @transform_3(%arg0: i32) -> (i32, i32) {
    %c0_i32 = arith.constant 0 : i32
    %c0_i32_0 = arith.constant 0 : i32
    %c0_i32_1 = arith.constant 0 : i32
    return %c0_i32, %c0_i32_0 : i32, i32
  }
  func.func @transform_4(%arg0: i32) -> (i32, i32) {
    %c0_i32 = arith.constant 0 : i32
    %c0_i32_0 = arith.constant 0 : i32
    %c0_i32_1 = arith.constant 0 : i32
    return %c0_i32, %c0_i32_0 : i32, i32
  }
  func.func @transform_5(%arg0: i32) -> (i32, i32) {
    %c0_i32 = arith.constant 0 : i32
    %c0_i32_0 = arith.constant 0 : i32
    %c0_i32_1 = arith.constant 0 : i32
    return %c0_i32, %c0_i32_0 : i32, i32
  }
  func.func @transform_6(%arg0: i32) -> (i32, i32) {
    %c0_i32 = arith.constant 0 : i32
    %c0_i32_0 = arith.constant 0 : i32
    %c0_i32_1 = arith.constant 0 : i32
    return %c0_i32, %c0_i32_0 : i32, i32
  }
  func.func @transform_7(%arg0: i32) -> (i32, i32) {
    %c0_i32 = arith.constant 0 : i32
    %c0_i32_0 = arith.constant 0 : i32
    %c0_i32_1 = arith.constant 0 : i32
    return %c0_i32, %c0_i32_0 : i32, i32
  }
  func.func @transform_8(%arg0: i32) -> (i32, i32) {
    %c0_i32 = arith.constant 0 : i32
    %c0_i32_0 = arith.constant 0 : i32
    %c0_i32_1 = arith.constant 0 : i32
    return %c0_i32, %c0_i32_0 : i32, i32
  }
  func.func @transform_9(%arg0: i32) -> (i32, i32) {
    %c0_i32 = arith.constant 0 : i32
    %c0_i32_0 = arith.constant 0 : i32
    %c0_i32_1 = arith.constant 0 : i32
    return %c0_i32, %c0_i32_0 : i32, i32
  }
  func.func @transform_10(%arg0: i32) -> (i32, i32) {
    %c0_i32 = arith.constant 0 : i32
    %c0_i32_0 = arith.constant 0 : i32
    %c0_i32_1 = arith.constant 0 : i32
    return %c0_i32, %c0_i32_0 : i32, i32
  }
  func.func @transform_11(%arg0: i32) -> (i32, i32) {
    %c0_i32 = arith.constant 0 : i32
    %c0_i32_0 = arith.constant 0 : i32
    %c0_i32_1 = arith.constant 0 : i32
    return %c0_i32, %c0_i32_0 : i32, i32
  }
  func.func @transform_12(%arg0: i32) -> (i32, i32) {
    %c0_i32 = arith.constant 0 : i32
    %c0_i32_0 = arith.constant 0 : i32
    %c0_i32_1 = arith.constant 0 : i32
    return %c0_i32, %c0_i32_0 : i32, i32
  }
  func.func @transform_13(%arg0: i32) -> (i32, i32) {
    %c0_i32 = arith.constant 0 : i32
    %c0_i32_0 = arith.constant 0 : i32
    return %arg0, %c0_i32 : i32, i32
  }
}

</mosaic_0001>

<llo_original>
// kernel: cultural_pattern_classifier.1
$region0: #{cultural_pattern_classifier.1}
  #allocation0 [shape = 'u32[]', space=smem, size = 0x4, offset = 0x4, fixed_abs, tag = 'smem constant byte address 0x4 - core index']
  #allocation1 [shape = 'u32[72,128]{1,0:T(1,128)}', space=vmem, size = 0x9000, scoped, tag = 'internal scratch']
  #allocation2 [shape = 'bf16[2,8,32]{2,1,0:T(8,128)(2,1)}', space=vmem, size = 0x1000, scoped, tag = 'scratch operand']
  %s0 = inlined_call_operand.vmem [shape: bf16[2,8,32], index: 0, kind: input, shape index: {}]
  %s1 = inlined_call_operand.vmem [shape: f32[2,1,8], index: 1, kind: input, shape index: {}]
  %s2 = inlined_call_operand.vmem [shape: bf16[32,96], index: 2, kind: input, shape index: {}]
  %s3 = inlined_call_operand.vmem [shape: f32[1,96], index: 3, kind: input, shape index: {}]
  %s4 = inlined_call_operand.vmem [shape: bf16[32,32], index: 4, kind: input, shape index: {}]
  %s5 = inlined_call_operand.vmem [shape: bf16[32,64], index: 5, kind: input, shape index: {}]
  %s6 = inlined_call_operand.vmem [shape: f32[1,64], index: 6, kind: input, shape index: {}]
  %s7 = inlined_call_operand.vmem [shape: bf16[64,32], index: 7, kind: input, shape index: {}]
  %s8 = inlined_call_operand.vmem [shape: bf16[32,32], index: 8, kind: input, shape index: {}]
  %s9 = inlined_call_operand.vmem [shape: bf16[32,32], index: 9, kind: input, shape index: {}]
  %s10 = inlined_call_operand.vmem [shape: bf16[32,128], index: 10, kind: input, shape index: {}]
  %s11 = inlined_call_operand.vmem [shape: f32[1,128], index: 11, kind: input, shape index: {}]
  %s12 = inlined_call_operand.vmem [shape: f32[10,32], index: 12, kind: input, shape index: {}]
  %s13 = inlined_call_operand.hbm [shape: f32[2,128], index: 13, kind: output, shape index: {}]
  %s14 = sld [smem:[#allocation0]]
  $region62: #{cultural_pattern_classifier.1} parent=0
    _
  %s16 = ssub.s32 1, %s14
  %s17 = scalar_select 0, %s16, %s14
  $region1: #{cultural_pattern_classifier.1} parent=0
    #allocation3 [shape = 'u8[1024]{0}', space=vmem, size = 0x400, scoped, tag = 'output window, operand 0, single buffered']
    #allocation4 [shape = 's32[1]{0}', space=sflag, size = 0x4, scoped, tag = 'scoped memory for cultural_pattern_classifier.1']
    %18 = vsyncpa [#allocation4], 0
    // Predicated region
    $region2: #{cultural_pattern_classifier.1} parent=1 // pred_check
      _
    $region3: #{cultural_pattern_classifier.1} parent=1 // pred_check_branch
      %20 = sbr.rel (0) target = $region5
    $region4: #{cultural_pattern_classifier.1} parent=1 // pred_region
      _
    $region5: #{cultural_pattern_classifier.1} parent=1 // pred_fallthru
      _
    // Predicated region
    $region6: #{cultural_pattern_classifier.1} parent=1 // pred_check
      _
    $region7: #{cultural_pattern_classifier.1} parent=1 // pred_check_branch
      %22 = sbr.rel (0) target = $region9
    $region8: #{cultural_pattern_classifier.1} parent=1 // pred_region
      _
    $region9: #{cultural_pattern_classifier.1} parent=1 // pred_fallthru
      _
    // Predicated region
    $region10: #{cultural_pattern_classifier.1} parent=1 // pred_check
      _
    $region11: #{cultural_pattern_classifier.1} parent=1 // pred_check_branch
      %24 = sbr.rel (0) target = $region13
    $region12: #{cultural_pattern_classifier.1} parent=1 // pred_region
      _
    $region13: #{cultural_pattern_classifier.1} parent=1 // pred_fallthru
      _
    // Predicated region
    $region14: #{cultural_pattern_classifier.1} parent=1 // pred_check
      _
    $region15: #{cultural_pattern_classifier.1} parent=1 // pred_check_branch
      %26 = sbr.rel (0) target = $region17
    $region16: #{cultural_pattern_classifier.1} parent=1 // pred_region
      _
    $region17: #{cultural_pattern_classifier.1} parent=1 // pred_fallthru
      _
    // Predicated region
    $region18: #{cultural_pattern_classifier.1} parent=1 // pred_check
      _
    $region19: #{cultural_pattern_classifier.1} parent=1 // pred_check_branch
      %28 = sbr.rel (0) target = $region21
    $region20: #{cultural_pattern_classifier.1} parent=1 // pred_region
      _
    $region21: #{cultural_pattern_classifier.1} parent=1 // pred_fallthru
      _
    // Predicated region
    $region22: #{cultural_pattern_classifier.1} parent=1 // pred_check
      _
    $region23: #{cultural_pattern_classifier.1} parent=1 // pred_check_branch
      %30 = sbr.rel (0) target = $region25
    $region24: #{cultural_pattern_classifier.1} parent=1 // pred_region
      _
    $region25: #{cultural_pattern_classifier.1} parent=1 // pred_fallthru
      _
    // Predicated region
    $region26: #{cultural_pattern_classifier.1} parent=1 // pred_check
      _
    $region27: #{cultural_pattern_classifier.1} parent=1 // pred_check_branch
      %32 = sbr.rel (0) target = $region29
    $region28: #{cultural_pattern_classifier.1} parent=1 // pred_region
      _
    $region29: #{cultural_pattern_classifier.1} parent=1 // pred_fallthru
      _
    // Predicated region
    $region30: #{cultural_pattern_classifier.1} parent=1 // pred_check
      _
    $region31: #{cultural_pattern_classifier.1} parent=1 // pred_check_branch
      %34 = sbr.rel (0) target = $region33
    $region32: #{cultural_pattern_classifier.1} parent=1 // pred_region
      _
    $region33: #{cultural_pattern_classifier.1} parent=1 // pred_fallthru
      _
    // Predicated region
    $region34: #{cultural_pattern_classifier.1} parent=1 // pred_check
      _
    $region35: #{cultural_pattern_classifier.1} parent=1 // pred_check_branch
      %36 = sbr.rel (0) target = $region37
    $region36: #{cultural_pattern_classifier.1} parent=1 // pred_region
      _
    $region37: #{cultural_pattern_classifier.1} parent=1 // pred_fallthru
      _
    // Predicated region
    $region38: #{cultural_pattern_classifier.1} parent=1 // pred_check
      _
    $region39: #{cultural_pattern_classifier.1} parent=1 // pred_check_branch
      %38 = sbr.rel (0) target = $region41
    $region40: #{cultural_pattern_classifier.1} parent=1 // pred_region
      _
    $region41: #{cultural_pattern_classifier.1} parent=1 // pred_fallthru
      _
    // Predicated region
    $region42: #{cultural_pattern_classifier.1} parent=1 // pred_check
      _
    $region43: #{cultural_pattern_classifier.1} parent=1 // pred_check_branch
      %40 = sbr.rel (0) target = $region45
    $region44: #{cultural_pattern_classifier.1} parent=1 // pred_region
      _
    $region45: #{cultural_pattern_classifier.1} parent=1 // pred_fallthru
      _
    // Predicated region
    $region46: #{cultural_pattern_classifier.1} parent=1 // pred_check
      _
    $region47: #{cultural_pattern_classifier.1} parent=1 // pred_check_branch
      %42 = sbr.rel (0) target = $region49
    $region48: #{cultural_pattern_classifier.1} parent=1 // pred_region
      _
    $region49: #{cultural_pattern_classifier.1} parent=1 // pred_fallthru
      _
    // Predicated region
    $region50: #{cultural_pattern_classifier.1} parent=1 // pred_check
      _
    $region51: #{cultural_pattern_classifier.1} parent=1 // pred_check_branch
      %44 = sbr.rel (0) target = $region53
    $region52: #{cultural_pattern_classifier.1} parent=1 // pred_region
      _
    $region53: #{cultural_pattern_classifier.1} parent=1 // pred_fallthru
      _
    %v46 = vld [vmem:[%s0] sm:$0xf]
    %v47 = vld [vmem:[%s0 + $0x4] sm:$0xf]
    %v48 = vunpack.c.l.bf16 %v46
    %v49 = vunpack.c.l.bf16 %v47
    %v50 = vld [vmem:[%s12] sm:$0xff]
    %v51 = vld [vmem:[%s12 + $0x8] sm:$0x3]
    %v52 = vld [vmem:[%s1] sm:$0x1]
    %v53 = vld [vmem:[%s1 + $0x1] sm:$0x1]
    %v54 = vsub.f32 %v52, 1.0
    %v55 = vsub.f32 %v53, 1.0
    %v56 = vmul.f32 %v54, 1e+09
    %v57 = vmul.f32 %v55, 1e+09
    %v58 = vld [vmem:[%s2] sm:$0xf]
    %v59 = vld [vmem:[%s2 + $0x4] sm:$0xf]
    %v60 = vld [vmem:[%s2 + $0x8] sm:$0xf]
    %v61 = vld [vmem:[%s2 + $0xc] sm:$0xf]
    %v62 = vld [vmem:[%s3] sm:$0x1]
    %v64 = vperm.slane %v62, 0
    %v68 = vunpack.c.l.b16 %v46
    %v69 = vunpack.c.l.b16 %v47
    %v70 = vpack.c.b16 %v69, %v68
    %v75 = vunpack.c.l.b16 %v58
    %v76 = vunpack.c.l.b16 %v59
    %v77 = vunpack.c.l.b16 %v60
    %v78 = vunpack.c.l.b16 %v61
    %v79 = vpack.c.b16 %v76, %v75
    %v80 = vpack.c.b16 %v78, %v77
    %vm83 = vcmask 261120
    %v85 = vsel %vm83, %v70, 0
    %87 = vmatpush.bf16.msra.mxu0 0
    %88 = vmatpush.bf16.msra.mxu0 0
    %89 = vmatpush.bf16.msra.mxu0 0
    %90 = vmatpush.bf16.msra.mxu0 0
    %91 = vmatpush.bf16.msra.mxu0 0
    %92 = vmatpush.bf16.msra.mxu0 0
    %93 = vmatpush.bf16.msra.mxu0 %v80
    %94 = vmatpush.bf16.msra.mxu0 %v79
    %95 = vmatmul.bf16.gmra.mxu0 %v85
    %v96 = vpop.f32.mrf.mxu0
    %v97 = vadd.f32 %v64, %v96
    %v98 = vpop.f32.mrf.mxu0
    %v99 = vadd.f32 %v64, %v98
    %100 = vdwg.mxu0
    %v101 = vpack.c.bf16 %v97, %v97
    %v102 = vpack.c.bf16 %v99, %v99
    %v104 = vunpack.c.l.b16 %v101
    %v105 = vpack.c.b16 %v104, %v104
    %106 = vrot.lane.b32.xlu0 %v105, 96
    %v107 = vpop.permute.xlu0 %106
    %vm108 = vcmask 31744
    %v110 = vsel %vm108, %v101, 0
    %v113 = vsel %vm108, %v107, 0
    %115 = vmatpush.bf16.xpose.msra.mxu0 0
    %116 = vmatpush.bf16.xpose.msra.mxu0 0
    %117 = vmatpush.bf16.xpose.msra.mxu0 0
    %118 = vmatpush.bf16.xpose.msra.mxu0 0
    %119 = vmatpush.bf16.xpose.msra.mxu0 0
    %120 = vmatpush.bf16.xpose.msra.mxu0 0
    %121 = vmatpush.bf16.xpose.msra.mxu0 0
    %122 = vmatpush.bf16.xpose.msra.mxu0 %v113
    %123 = vmatmul.bf16.gmra.mxu0 %v110
    %v124 = vpop.f32.mrf.mxu0
    %v125 = vadd.f32 0.0, %v124
    %v126 = vpop.f32.mrf.mxu0
    %127 = vdwg.mxu0
    %v129 = vunpack.c.l.b16 %v102
    %v130 = vpack.c.b16 %v129, %v129
    %131 = vrot.lane.b32.xlu0 %v130, 96
    %v132 = vpop.permute.xlu0 %131
    %v134 = vsel %vm108, %v102, 0
    %v137 = vsel %vm108, %v132, 0
    %139 = vmatpush.bf16.xpose.msra.mxu0 0
    %140 = vmatpush.bf16.xpose.msra.mxu0 0
    %141 = vmatpush.bf16.xpose.msra.mxu0 0
    %142 = vmatpush.bf16.xpose.msra.mxu0 0
    %143 = vmatpush.bf16.xpose.msra.mxu0 0
    %144 = vmatpush.bf16.xpose.msra.mxu0 0
    %145 = vmatpush.bf16.xpose.msra.mxu0 0
    %146 = vmatpush.bf16.xpose.msra.mxu0 %v137
    %147 = vmatmul.bf16.gmra.mxu0 %v134
    %v148 = vpop.f32.mrf.mxu0
    %v149 = vadd.f32 0.0, %v148
    %v150 = vpop.f32.mrf.mxu0
    %151 = vdwg.mxu0
    %v152 = vmul.f32 %v125, 0.5
    %v153 = vmul.f32 %v149, 0.5
    %v156 = vperm.slane %v56, 0
    %v157 = vperm.slane %v57, 0
    %v160 = vadd.f32 %v152, %v156
    %v161 = vadd.f32 %v153, %v157
    %vm162 = vcmask 64512
    %v163 = vsel %vm162, %v160, -inf
    %164 = vmax.xlane.f32.xlu0 %v163
    %v165 = vpop.xlane.xlu0 %164
    %v166 = vsel %vm162, %v161, -inf
    %167 = vmax.xlane.f32.xlu0 %v166
    %v168 = vpop.xlane.xlu0 %167
    %v169 = vsub.f32 %v160, %v165
    %v170 = vsub.f32 %v161, %v168
    %v171 = vmul.f32 %v169, 1.442695
    %v172 = vpow.pop %v171
    %v173 = vmul.f32 %v170, 1.442695
    %v174 = vpow.pop %v173
    %v175 = vsel %vm162, %v172, 0.0
    %176 = vadd.xlane.f32.xlu0 %v175
    %v177 = vpop.xlane.xlu0 %176
    %v178 = vsel %vm162, %v174, 0.0
    %179 = vadd.xlane.f32.xlu0 %v178
    %v180 = vpop.xlane.xlu0 %179
    %v181 = vrcp.pop %v177
    %v182 = vrcp.pop %v180
    %v183 = vmul.f32 %v172, %v181
    %v184 = vmul.f32 %v174, %v182
    %v185 = vpack.c.bf16 %v183, %v183
    %v186 = vpack.c.bf16 %v184, %v184
    %187 = vrot.lane.b32.xlu0 %v105, 64
    %v188 = vpop.permute.xlu0 %187
    %v190 = vsel %vm162, %v185, 0
    %vm192 = vcmask 1043456
    %v194 = vsel %vm192, %v188, 0
    %196 = vmatpush.bf16.msra.mxu0 0
    %197 = vmatpush.bf16.msra.mxu0 0
    %198 = vmatpush.bf16.msra.mxu0 0
    %199 = vmatpush.bf16.msra.mxu0 0
    %200 = vmatpush.bf16.msra.mxu0 0
    %201 = vmatpush.bf16.msra.mxu0 0
    %202 = vmatpush.bf16.msra.mxu0 0
    %203 = vmatpush.bf16.msra.mxu0 %v194
    %204 = vmatmul.bf16.gmra.mxu0 %v190
    %v205 = vpop.f32.mrf.mxu0
    %v206 = vadd.f32 0.0, %v205
    %v207 = vpop.f32.mrf.mxu0
    %208 = vdwg.mxu0
    %209 = vrot.lane.b32.xlu0 %v130, 64
    %v210 = vpop.permute.xlu0 %209
    %v212 = vsel %vm162, %v186, 0
    %v215 = vsel %vm192, %v210, 0
    %217 = vmatpush.bf16.msra.mxu0 0
    %218 = vmatpush.bf16.msra.mxu0 0
    %219 = vmatpush.bf16.msra.mxu0 0
    %220 = vmatpush.bf16.msra.mxu0 0
    %221 = vmatpush.bf16.msra.mxu0 0
    %222 = vmatpush.bf16.msra.mxu0 0
    %223 = vmatpush.bf16.msra.mxu0 0
    %224 = vmatpush.bf16.msra.mxu0 %v215
    %225 = vmatmul.bf16.gmra.mxu0 %v212
    %v226 = vpop.f32.mrf.mxu0
    %v227 = vadd.f32 0.0, %v226
    %v228 = vpop.f32.mrf.mxu0
    %229 = vdwg.mxu0
    %v230 = vpack.c.bf16 %v206, %v206
    %v231 = vpack.c.bf16 %v227, %v227
    %vm232 = vcmask 27648
    %233 = vst.msk [vmem:[#allocation2] sm:$0xf] %vm232, %v230
    %234 = vst.msk [vmem:[#allocation2 + $0x4] sm:$0xf] %vm232, %v231
    %235 = vrot.lane.b32.xlu0 %v105, 124
    %v236 = vpop.permute.xlu0 %235
    %237 = vrot.lane.b32.xlu0 %v105, 92
    %v238 = vpop.permute.xlu0 %237
    %v240 = vsel %vm108, %v236, 0
    %v243 = vsel %vm108, %v238, 0
    %245 = vmatpush.bf16.xpose.msra.mxu0 0
    %246 = vmatpush.bf16.xpose.msra.mxu0 0
    %247 = vmatpush.bf16.xpose.msra.mxu0 0
    %248 = vmatpush.bf16.xpose.msra.mxu0 0
    %249 = vmatpush.bf16.xpose.msra.mxu0 0
    %250 = vmatpush.bf16.xpose.msra.mxu0 0
    %251 = vmatpush.bf16.xpose.msra.mxu0 0
    %252 = vmatpush.bf16.xpose.msra.mxu0 %v243
    %253 = vmatmul.bf16.gmra.mxu0 %v240
    %v254 = vpop.f32.mrf.mxu0
    %v255 = vadd.f32 0.0, %v254
    %v256 = vpop.f32.mrf.mxu0
    %257 = vdwg.mxu0
    %258 = vrot.lane.b32.xlu0 %v130, 124
    %v259 = vpop.permute.xlu0 %258
    %260 = vrot.lane.b32.xlu0 %v130, 92
    %v261 = vpop.permute.xlu0 %260
    %v263 = vsel %vm108, %v259, 0
    %v266 = vsel %vm108, %v261, 0
    %268 = vmatpush.bf16.xpose.msra.mxu0 0
    %269 = vmatpush.bf16.xpose.msra.mxu0 0
    %270 = vmatpush.bf16.xpose.msra.mxu0 0
    %271 = vmatpush.bf16.xpose.msra.mxu0 0
    %272 = vmatpush.bf16.xpose.msra.mxu0 0
    %273 = vmatpush.bf16.xpose.msra.mxu0 0
    %274 = vmatpush.bf16.xpose.msra.mxu0 0
    %275 = vmatpush.bf16.xpose.msra.mxu0 %v266
    %276 = vmatmul.bf16.gmra.mxu0 %v263
    %v277 = vpop.f32.mrf.mxu0
    %v278 = vadd.f32 0.0, %v277
    %v279 = vpop.f32.mrf.mxu0
    %280 = vdwg.mxu0
    %v281 = vmul.f32 %v255, 0.5
    %v282 = vmul.f32 %v278, 0.5
    %v283 = vadd.f32 %v281, %v156
    %v284 = vadd.f32 %v282, %v157
    %v285 = vsel %vm162, %v283, -inf
    %286 = vmax.xlane.f32.xlu0 %v285
    %v287 = vpop.xlane.xlu0 %286
    %v288 = vsel %vm162, %v284, -inf
    %289 = vmax.xlane.f32.xlu0 %v288
    %v290 = vpop.xlane.xlu0 %289
    %v291 = vsub.f32 %v283, %v287
    %v292 = vsub.f32 %v284, %v290
    %v293 = vmul.f32 %v291, 1.442695
    %v294 = vpow.pop %v293
    %v295 = vmul.f32 %v292, 1.442695
    %v296 = vpow.pop %v295
    %v297 = vsel %vm162, %v294, 0.0
    %298 = vadd.xlane.f32.xlu0 %v297
    %v299 = vpop.xlane.xlu0 %298
    %v300 = vsel %vm162, %v296, 0.0
    %301 = vadd.xlane.f32.xlu0 %v300
    %v302 = vpop.xlane.xlu0 %301
    %v303 = vrcp.pop %v299
    %v304 = vrcp.pop %v302
    %v305 = vmul.f32 %v294, %v303
    %v306 = vmul.f32 %v296, %v304
    %v307 = vpack.c.bf16 %v305, %v305
    %v308 = vpack.c.bf16 %v306, %v306
    %309 = vrot.lane.b32.xlu0 %v105, 60
    %v310 = vpop.permute.xlu0 %309
    %v312 = vsel %vm162, %v307, 0
    %v315 = vsel %vm192, %v310, 0
    %317 = vmatpush.bf16.msra.mxu0 0
    %318 = vmatpush.bf16.msra.mxu0 0
    %319 = vmatpush.bf16.msra.mxu0 0
    %320 = vmatpush.bf16.msra.mxu0 0
    %321 = vmatpush.bf16.msra.mxu0 0
    %322 = vmatpush.bf16.msra.mxu0 0
    %323 = vmatpush.bf16.msra.mxu0 0
    %324 = vmatpush.bf16.msra.mxu0 %v315
    %325 = vmatmul.bf16.gmra.mxu0 %v312
    %v326 = vpop.f32.mrf.mxu0
    %v327 = vadd.f32 0.0, %v326
    %v328 = vpop.f32.mrf.mxu0
    %329 = vdwg.mxu0
    %330 = vrot.lane.b32.xlu0 %v130, 60
    %v331 = vpop.permute.xlu0 %330
    %v333 = vsel %vm162, %v308, 0
    %v336 = vsel %vm192, %v331, 0
    %338 = vmatpush.bf16.msra.mxu0 0
    %339 = vmatpush.bf16.msra.mxu0 0
    %340 = vmatpush.bf16.msra.mxu0 0
    %341 = vmatpush.bf16.msra.mxu0 0
    %342 = vmatpush.bf16.msra.mxu0 0
    %343 = vmatpush.bf16.msra.mxu0 0
    %344 = vmatpush.bf16.msra.mxu0 0
    %345 = vmatpush.bf16.msra.mxu0 %v336
    %346 = vmatmul.bf16.gmra.mxu0 %v333
    %v347 = vpop.f32.mrf.mxu0
    %v348 = vadd.f32 0.0, %v347
    %v349 = vpop.f32.mrf.mxu0
    %350 = vdwg.mxu0
    %v351 = vpack.c.bf16 %v327, %v327
    %v352 = vpack.c.bf16 %v348, %v348
    %355 = vrot.lane.b32.xlu0 %v351, 4
    %v356 = vpop.permute.xlu0 %355
    %357 = vrot.lane.b32.xlu0 %v352, 4
    %v358 = vpop.permute.xlu0 %357
    %vm361 = vcmask 60448
    %362 = vst.msk [vmem:[#allocation2] sm:$0xf] %vm361, %v356
    %363 = vst.msk [vmem:[#allocation2 + $0x4] sm:$0xf] %vm361, %v358
    %364 = vrot.lane.b32.xlu0 %v105, 120
    %v365 = vpop.permute.xlu0 %364
    %366 = vrot.lane.b32.xlu0 %v105, 88
    %v367 = vpop.permute.xlu0 %366
    %v369 = vsel %vm108, %v365, 0
    %v372 = vsel %vm108, %v367, 0
    %374 = vmatpush.bf16.xpose.msra.mxu0 0
    %375 = vmatpush.bf16.xpose.msra.mxu0 0
    %376 = vmatpush.bf16.xpose.msra.mxu0 0
    %377 = vmatpush.bf16.xpose.msra.mxu0 0
    %378 = vmatpush.bf16.xpose.msra.mxu0 0
    %379 = vmatpush.bf16.xpose.msra.mxu0 0
    %380 = vmatpush.bf16.xpose.msra.mxu0 0
    %381 = vmatpush.bf16.xpose.msra.mxu0 %v372
    %382 = vmatmul.bf16.gmra.mxu0 %v369
    %v383 = vpop.f32.mrf.mxu0
    %v384 = vadd.f32 0.0, %v383
    %v385 = vpop.f32.mrf.mxu0
    %386 = vdwg.mxu0
    %387 = vrot.lane.b32.xlu0 %v130, 120
    %v388 = vpop.permute.xlu0 %387
    %389 = vrot.lane.b32.xlu0 %v130, 88
    %v390 = vpop.permute.xlu0 %389
    %v392 = vsel %vm108, %v388, 0
    %v395 = vsel %vm108, %v390, 0
    %397 = vmatpush.bf16.xpose.msra.mxu0 0
    %398 = vmatpush.bf16.xpose.msra.mxu0 0
    %399 = vmatpush.bf16.xpose.msra.mxu0 0
    %400 = vmatpush.bf16.xpose.msra.mxu0 0
    %401 = vmatpush.bf16.xpose.msra.mxu0 0
    %402 = vmatpush.bf16.xpose.msra.mxu0 0
    %403 = vmatpush.bf16.xpose.msra.mxu0 0
    %404 = vmatpush.bf16.xpose.msra.mxu0 %v395
    %405 = vmatmul.bf16.gmra.mxu0 %v392
    %v406 = vpop.f32.mrf.mxu0
    %v407 = vadd.f32 0.0, %v406
    %v408 = vpop.f32.mrf.mxu0
    %409 = vdwg.mxu0
    %v410 = vmul.f32 %v384, 0.5
    %v411 = vmul.f32 %v407, 0.5
    %v412 = vadd.f32 %v410, %v156
    %v413 = vadd.f32 %v411, %v157
    %v414 = vsel %vm162, %v412, -inf
    %415 = vmax.xlane.f32.xlu0 %v414
    %v416 = vpop.xlane.xlu0 %415
    %v417 = vsel %vm162, %v413, -inf
    %418 = vmax.xlane.f32.xlu0 %v417
    %v419 = vpop.xlane.xlu0 %418
    %v420 = vsub.f32 %v412, %v416
    %v421 = vsub.f32 %v413, %v419
    %v422 = vmul.f32 %v420, 1.442695
    %v423 = vpow.pop %v422
    %v424 = vmul.f32 %v421, 1.442695
    %v425 = vpow.pop %v424
    %v426 = vsel %vm162, %v423, 0.0
    %427 = vadd.xlane.f32.xlu0 %v426
    %v428 = vpop.xlane.xlu0 %427
    %v429 = vsel %vm162, %v425, 0.0
    %430 = vadd.xlane.f32.xlu0 %v429
    %v431 = vpop.xlane.xlu0 %430
    %v432 = vrcp.pop %v428
    %v433 = vrcp.pop %v431
    %v434 = vmul.f32 %v423, %v432
    %v435 = vmul.f32 %v425, %v433
    %v436 = vpack.c.bf16 %v434, %v434
    %v437 = vpack.c.bf16 %v435, %v435
    %438 = vrot.lane.b32.xlu0 %v105, 56
    %v439 = vpop.permute.xlu0 %438
    %v441 = vsel %vm162, %v436, 0
    %v444 = vsel %vm192, %v439, 0
    %446 = vmatpush.bf16.msra.mxu0 0
    %447 = vmatpush.bf16.msra.mxu0 0
    %448 = vmatpush.bf16.msra.mxu0 0
    %449 = vmatpush.bf16.msra.mxu0 0
    %450 = vmatpush.bf16.msra.mxu0 0
    %451 = vmatpush.bf16.msra.mxu0 0
    %452 = vmatpush.bf16.msra.mxu0 0
    %453 = vmatpush.bf16.msra.mxu0 %v444
    %454 = vmatmul.bf16.gmra.mxu0 %v441
    %v455 = vpop.f32.mrf.mxu0
    %v456 = vadd.f32 0.0, %v455
    %v457 = vpop.f32.mrf.mxu0
    %458 = vdwg.mxu0
    %459 = vrot.lane.b32.xlu0 %v130, 56
    %v460 = vpop.permute.xlu0 %459
    %v462 = vsel %vm162, %v437, 0
    %v465 = vsel %vm192, %v460, 0
    %467 = vmatpush.bf16.msra.mxu0 0
    %468 = vmatpush.bf16.msra.mxu0 0
    %469 = vmatpush.bf16.msra.mxu0 0
    %470 = vmatpush.bf16.msra.mxu0 0
    %471 = vmatpush.bf16.msra.mxu0 0
    %472 = vmatpush.bf16.msra.mxu0 0
    %473 = vmatpush.bf16.msra.mxu0 0
    %474 = vmatpush.bf16.msra.mxu0 %v465
    %475 = vmatmul.bf16.gmra.mxu0 %v462
    %v476 = vpop.f32.mrf.mxu0
    %v477 = vadd.f32 0.0, %v476
    %v478 = vpop.f32.mrf.mxu0
    %479 = vdwg.mxu0
    %v480 = vpack.c.bf16 %v456, %v456
    %v481 = vpack.c.bf16 %v477, %v477
    %484 = vrot.lane.b32.xlu0 %v480, 8
    %v485 = vpop.permute.xlu0 %484
    %486 = vrot.lane.b32.xlu0 %v481, 8
    %v487 = vpop.permute.xlu0 %486
    %vm490 = vcmask 93248
    %491 = vst.msk [vmem:[#allocation2] sm:$0xf] %vm490, %v485
    %492 = vst.msk [vmem:[#allocation2 + $0x4] sm:$0xf] %vm490, %v487
    %493 = vrot.lane.b32.xlu0 %v105, 116
    %v494 = vpop.permute.xlu0 %493
    %495 = vrot.lane.b32.xlu0 %v105, 84
    %v496 = vpop.permute.xlu0 %495
    %v498 = vsel %vm108, %v494, 0
    %v501 = vsel %vm108, %v496, 0
    %503 = vmatpush.bf16.xpose.msra.mxu0 0
    %504 = vmatpush.bf16.xpose.msra.mxu0 0
    %505 = vmatpush.bf16.xpose.msra.mxu0 0
    %506 = vmatpush.bf16.xpose.msra.mxu0 0
    %507 = vmatpush.bf16.xpose.msra.mxu0 0
    %508 = vmatpush.bf16.xpose.msra.mxu0 0
    %509 = vmatpush.bf16.xpose.msra.mxu0 0
    %510 = vmatpush.bf16.xpose.msra.mxu0 %v501
    %511 = vmatmul.bf16.gmra.mxu0 %v498
    %v512 = vpop.f32.mrf.mxu0
    %v513 = vadd.f32 0.0, %v512
    %v514 = vpop.f32.mrf.mxu0
    %515 = vdwg.mxu0
    %516 = vrot.lane.b32.xlu0 %v130, 116
    %v517 = vpop.permute.xlu0 %516
    %518 = vrot.lane.b32.xlu0 %v130, 84
    %v519 = vpop.permute.xlu0 %518
    %v521 = vsel %vm108, %v517, 0
    %v524 = vsel %vm108, %v519, 0
    %526 = vmatpush.bf16.xpose.msra.mxu0 0
    %527 = vmatpush.bf16.xpose.msra.mxu0 0
    %528 = vmatpush.bf16.xpose.msra.mxu0 0
    %529 = vmatpush.bf16.xpose.msra.mxu0 0
    %530 = vmatpush.bf16.xpose.msra.mxu0 0
    %531 = vmatpush.bf16.xpose.msra.mxu0 0
    %532 = vmatpush.bf16.xpose.msra.mxu0 0
    %533 = vmatpush.bf16.xpose.msra.mxu0 %v524
    %534 = vmatmul.bf16.gmra.mxu0 %v521
    %v535 = vpop.f32.mrf.mxu0
    %v536 = vadd.f32 0.0, %v535
    %v537 = vpop.f32.mrf.mxu0
    %538 = vdwg.mxu0
    %v539 = vmul.f32 %v513, 0.5
    %v540 = vmul.f32 %v536, 0.5
    %v541 = vadd.f32 %v539, %v156
    %v542 = vadd.f32 %v540, %v157
    %v543 = vsel %vm162, %v541, -inf
    %544 = vmax.xlane.f32.xlu0 %v543
    %v545 = vpop.xlane.xlu0 %544
    %v546 = vsel %vm162, %v542, -inf
    %547 = vmax.xlane.f32.xlu0 %v546
    %v548 = vpop.xlane.xlu0 %547
    %v549 = vsub.f32 %v541, %v545
    %v550 = vsub.f32 %v542, %v548
    %v551 = vmul.f32 %v549, 1.442695
    %v552 = vpow.pop %v551
    %v553 = vmul.f32 %v550, 1.442695
    %v554 = vpow.pop %v553
    %v555 = vsel %vm162, %v552, 0.0
    %556 = vadd.xlane.f32.xlu0 %v555
    %v557 = vpop.xlane.xlu0 %556
    %v558 = vsel %vm162, %v554, 0.0
    %559 = vadd.xlane.f32.xlu0 %v558
    %v560 = vpop.xlane.xlu0 %559
    %v561 = vrcp.pop %v557
    %v562 = vrcp.pop %v560
    %v563 = vmul.f32 %v552, %v561
    %v564 = vmul.f32 %v554, %v562
    %v565 = vpack.c.bf16 %v563, %v563
    %v566 = vpack.c.bf16 %v564, %v564
    %567 = vrot.lane.b32.xlu0 %v105, 52
    %v568 = vpop.permute.xlu0 %567
    %v570 = vsel %vm162, %v565, 0
    %v573 = vsel %vm192, %v568, 0
    %575 = vmatpush.bf16.msra.mxu0 0
    %576 = vmatpush.bf16.msra.mxu0 0
    %577 = vmatpush.bf16.msra.mxu0 0
    %578 = vmatpush.bf16.msra.mxu0 0
    %579 = vmatpush.bf16.msra.mxu0 0
    %580 = vmatpush.bf16.msra.mxu0 0
    %581 = vmatpush.bf16.msra.mxu0 0
    %582 = vmatpush.bf16.msra.mxu0 %v573
    %583 = vmatmul.bf16.gmra.mxu0 %v570
    %v584 = vpop.f32.mrf.mxu0
    %v585 = vadd.f32 0.0, %v584
    %v586 = vpop.f32.mrf.mxu0
    %587 = vdwg.mxu0
    %588 = vrot.lane.b32.xlu0 %v130, 52
    %v589 = vpop.permute.xlu0 %588
    %v591 = vsel %vm162, %v566, 0
    %v594 = vsel %vm192, %v589, 0
    %596 = vmatpush.bf16.msra.mxu0 0
    %597 = vmatpush.bf16.msra.mxu0 0
    %598 = vmatpush.bf16.msra.mxu0 0
    %599 = vmatpush.bf16.msra.mxu0 0
    %600 = vmatpush.bf16.msra.mxu0 0
    %601 = vmatpush.bf16.msra.mxu0 0
    %602 = vmatpush.bf16.msra.mxu0 0
    %603 = vmatpush.bf16.msra.mxu0 %v594
    %604 = vmatmul.bf16.gmra.mxu0 %v591
    %v605 = vpop.f32.mrf.mxu0
    %v606 = vadd.f32 0.0, %v605
    %v607 = vpop.f32.mrf.mxu0
    %608 = vdwg.mxu0
    %v609 = vpack.c.bf16 %v585, %v585
    %v610 = vpack.c.bf16 %v606, %v606
    %613 = vrot.lane.b32.xlu0 %v609, 12
    %v614 = vpop.permute.xlu0 %613
    %615 = vrot.lane.b32.xlu0 %v610, 12
    %v616 = vpop.permute.xlu0 %615
    %vm619 = vcmask 126048
    %620 = vst.msk [vmem:[#allocation2] sm:$0xf] %vm619, %v614
    %621 = vst.msk [vmem:[#allocation2 + $0x4] sm:$0xf] %vm619, %v616
    %622 = vrot.lane.b32.xlu0 %v105, 112
    %v623 = vpop.permute.xlu0 %622
    %624 = vrot.lane.b32.xlu0 %v105, 80
    %v625 = vpop.permute.xlu0 %624
    %v627 = vsel %vm108, %v623, 0
    %v630 = vsel %vm108, %v625, 0
    %632 = vmatpush.bf16.xpose.msra.mxu0 0
    %633 = vmatpush.bf16.xpose.msra.mxu0 0
    %634 = vmatpush.bf16.xpose.msra.mxu0 0
    %635 = vmatpush.bf16.xpose.msra.mxu0 0
    %636 = vmatpush.bf16.xpose.msra.mxu0 0
    %637 = vmatpush.bf16.xpose.msra.mxu0 0
    %638 = vmatpush.bf16.xpose.msra.mxu0 0
    %639 = vmatpush.bf16.xpose.msra.mxu0 %v630
    %640 = vmatmul.bf16.gmra.mxu0 %v627
    %v641 = vpop.f32.mrf.mxu0
    %v642 = vadd.f32 0.0, %v641
    %v643 = vpop.f32.mrf.mxu0
    %644 = vdwg.mxu0
    %645 = vrot.lane.b32.xlu0 %v130, 112
    %v646 = vpop.permute.xlu0 %645
    %647 = vrot.lane.b32.xlu0 %v130, 80
    %v648 = vpop.permute.xlu0 %647
    %v650 = vsel %vm108, %v646, 0
    %v653 = vsel %vm108, %v648, 0
    %655 = vmatpush.bf16.xpose.msra.mxu0 0
    %656 = vmatpush.bf16.xpose.msra.mxu0 0
    %657 = vmatpush.bf16.xpose.msra.mxu0 0
    %658 = vmatpush.bf16.xpose.msra.mxu0 0
    %659 = vmatpush.bf16.xpose.msra.mxu0 0
    %660 = vmatpush.bf16.xpose.msra.mxu0 0
    %661 = vmatpush.bf16.xpose.msra.mxu0 0
    %662 = vmatpush.bf16.xpose.msra.mxu0 %v653
    %663 = vmatmul.bf16.gmra.mxu0 %v650
    %v664 = vpop.f32.mrf.mxu0
    %v665 = vadd.f32 0.0, %v664
    %v666 = vpop.f32.mrf.mxu0
    %667 = vdwg.mxu0
    %v668 = vmul.f32 %v642, 0.5
    %v669 = vmul.f32 %v665, 0.5
    %v670 = vadd.f32 %v668, %v156
    %v671 = vadd.f32 %v669, %v157
    %v672 = vsel %vm162, %v670, -inf
    %673 = vmax.xlane.f32.xlu0 %v672
    %v674 = vpop.xlane.xlu0 %673
    %v675 = vsel %vm162, %v671, -inf
    %676 = vmax.xlane.f32.xlu0 %v675
    %v677 = vpop.xlane.xlu0 %676
    %v678 = vsub.f32 %v670, %v674
    %v679 = vsub.f32 %v671, %v677
    %v680 = vmul.f32 %v678, 1.442695
    %v681 = vpow.pop %v680
    %v682 = vmul.f32 %v679, 1.442695
    %v683 = vpow.pop %v682
    %v684 = vsel %vm162, %v681, 0.0
    %685 = vadd.xlane.f32.xlu0 %v684
    %v686 = vpop.xlane.xlu0 %685
    %v687 = vsel %vm162, %v683, 0.0
    %688 = vadd.xlane.f32.xlu0 %v687
    %v689 = vpop.xlane.xlu0 %688
    %v690 = vrcp.pop %v686
    %v691 = vrcp.pop %v689
    %v692 = vmul.f32 %v681, %v690
    %v693 = vmul.f32 %v683, %v691
    %v694 = vpack.c.bf16 %v692, %v692
    %v695 = vpack.c.bf16 %v693, %v693
    %696 = vrot.lane.b32.xlu0 %v105, 48
    %v697 = vpop.permute.xlu0 %696
    %v699 = vsel %vm162, %v694, 0
    %v702 = vsel %vm192, %v697, 0
    %704 = vmatpush.bf16.msra.mxu0 0
    %705 = vmatpush.bf16.msra.mxu0 0
    %706 = vmatpush.bf16.msra.mxu0 0
    %707 = vmatpush.bf16.msra.mxu0 0
    %708 = vmatpush.bf16.msra.mxu0 0
    %709 = vmatpush.bf16.msra.mxu0 0
    %710 = vmatpush.bf16.msra.mxu0 0
    %711 = vmatpush.bf16.msra.mxu0 %v702
    %712 = vmatmul.bf16.gmra.mxu0 %v699
    %v713 = vpop.f32.mrf.mxu0
    %v714 = vadd.f32 0.0, %v713
    %v715 = vpop.f32.mrf.mxu0
    %716 = vdwg.mxu0
    %717 = vrot.lane.b32.xlu0 %v130, 48
    %v718 = vpop.permute.xlu0 %717
    %v720 = vsel %vm162, %v695, 0
    %v723 = vsel %vm192, %v718, 0
    %725 = vmatpush.bf16.msra.mxu0 0
    %726 = vmatpush.bf16.msra.mxu0 0
    %727 = vmatpush.bf16.msra.mxu0 0
    %728 = vmatpush.bf16.msra.mxu0 0
    %729 = vmatpush.bf16.msra.mxu0 0
    %730 = vmatpush.bf16.msra.mxu0 0
    %731 = vmatpush.bf16.msra.mxu0 0
    %732 = vmatpush.bf16.msra.mxu0 %v723
    %733 = vmatmul.bf16.gmra.mxu0 %v720
    %v734 = vpop.f32.mrf.mxu0
    %v735 = vadd.f32 0.0, %v734
    %v736 = vpop.f32.mrf.mxu0
    %737 = vdwg.mxu0
    %v738 = vpack.c.bf16 %v714, %v714
    %v739 = vpack.c.bf16 %v735, %v735
    %742 = vrot.lane.b32.xlu0 %v738, 16
    %v743 = vpop.permute.xlu0 %742
    %744 = vrot.lane.b32.xlu0 %v739, 16
    %v745 = vpop.permute.xlu0 %744
    %vm748 = vcmask 158848
    %749 = vst.msk [vmem:[#allocation2] sm:$0xf] %vm748, %v743
    %750 = vst.msk [vmem:[#allocation2 + $0x4] sm:$0xf] %vm748, %v745
    %751 = vrot.lane.b32.xlu0 %v105, 108
    %v752 = vpop.permute.xlu0 %751
    %753 = vrot.lane.b32.xlu0 %v105, 76
    %v754 = vpop.permute.xlu0 %753
    %v756 = vsel %vm108, %v752, 0
    %v759 = vsel %vm108, %v754, 0
    %761 = vmatpush.bf16.xpose.msra.mxu0 0
    %762 = vmatpush.bf16.xpose.msra.mxu0 0
    %763 = vmatpush.bf16.xpose.msra.mxu0 0
    %764 = vmatpush.bf16.xpose.msra.mxu0 0
    %765 = vmatpush.bf16.xpose.msra.mxu0 0
    %766 = vmatpush.bf16.xpose.msra.mxu0 0
    %767 = vmatpush.bf16.xpose.msra.mxu0 0
    %768 = vmatpush.bf16.xpose.msra.mxu0 %v759
    %769 = vmatmul.bf16.gmra.mxu0 %v756
    %v770 = vpop.f32.mrf.mxu0
    %v771 = vadd.f32 0.0, %v770
    %v772 = vpop.f32.mrf.mxu0
    %773 = vdwg.mxu0
    %774 = vrot.lane.b32.xlu0 %v130, 108
    %v775 = vpop.permute.xlu0 %774
    %776 = vrot.lane.b32.xlu0 %v130, 76
    %v777 = vpop.permute.xlu0 %776
    %v779 = vsel %vm108, %v775, 0
    %v782 = vsel %vm108, %v777, 0
    %784 = vmatpush.bf16.xpose.msra.mxu0 0
    %785 = vmatpush.bf16.xpose.msra.mxu0 0
    %786 = vmatpush.bf16.xpose.msra.mxu0 0
    %787 = vmatpush.bf16.xpose.msra.mxu0 0
    %788 = vmatpush.bf16.xpose.msra.mxu0 0
    %789 = vmatpush.bf16.xpose.msra.mxu0 0
    %790 = vmatpush.bf16.xpose.msra.mxu0 0
    %791 = vmatpush.bf16.xpose.msra.mxu0 %v782
    %792 = vmatmul.bf16.gmra.mxu0 %v779
    %v793 = vpop.f32.mrf.mxu0
    %v794 = vadd.f32 0.0, %v793
    %v795 = vpop.f32.mrf.mxu0
    %796 = vdwg.mxu0
    %v797 = vmul.f32 %v771, 0.5
    %v798 = vmul.f32 %v794, 0.5
    %v799 = vadd.f32 %v797, %v156
    %v800 = vadd.f32 %v798, %v157
    %v801 = vsel %vm162, %v799, -inf
    %802 = vmax.xlane.f32.xlu0 %v801
    %v803 = vpop.xlane.xlu0 %802
    %v804 = vsel %vm162, %v800, -inf
    %805 = vmax.xlane.f32.xlu0 %v804
    %v806 = vpop.xlane.xlu0 %805
    %v807 = vsub.f32 %v799, %v803
    %v808 = vsub.f32 %v800, %v806
    %v809 = vmul.f32 %v807, 1.442695
    %v810 = vpow.pop %v809
    %v811 = vmul.f32 %v808, 1.442695
    %v812 = vpow.pop %v811
    %v813 = vsel %vm162, %v810, 0.0
    %814 = vadd.xlane.f32.xlu0 %v813
    %v815 = vpop.xlane.xlu0 %814
    %v816 = vsel %vm162, %v812, 0.0
    %817 = vadd.xlane.f32.xlu0 %v816
    %v818 = vpop.xlane.xlu0 %817
    %v819 = vrcp.pop %v815
    %v820 = vrcp.pop %v818
    %v821 = vmul.f32 %v810, %v819
    %v822 = vmul.f32 %v812, %v820
    %v823 = vpack.c.bf16 %v821, %v821
    %v824 = vpack.c.bf16 %v822, %v822
    %825 = vrot.lane.b32.xlu0 %v105, 44
    %v826 = vpop.permute.xlu0 %825
    %v828 = vsel %vm162, %v823, 0
    %v831 = vsel %vm192, %v826, 0
    %833 = vmatpush.bf16.msra.mxu0 0
    %834 = vmatpush.bf16.msra.mxu0 0
    %835 = vmatpush.bf16.msra.mxu0 0
    %836 = vmatpush.bf16.msra.mxu0 0
    %837 = vmatpush.bf16.msra.mxu0 0
    %838 = vmatpush.bf16.msra.mxu0 0
    %839 = vmatpush.bf16.msra.mxu0 0
    %840 = vmatpush.bf16.msra.mxu0 %v831
    %841 = vmatmul.bf16.gmra.mxu0 %v828
    %v842 = vpop.f32.mrf.mxu0
    %v843 = vadd.f32 0.0, %v842
    %v844 = vpop.f32.mrf.mxu0
    %845 = vdwg.mxu0
    %846 = vrot.lane.b32.xlu0 %v130, 44
    %v847 = vpop.permute.xlu0 %846
    %v849 = vsel %vm162, %v824, 0
    %v852 = vsel %vm192, %v847, 0
    %854 = vmatpush.bf16.msra.mxu0 0
    %855 = vmatpush.bf16.msra.mxu0 0
    %856 = vmatpush.bf16.msra.mxu0 0
    %857 = vmatpush.bf16.msra.mxu0 0
    %858 = vmatpush.bf16.msra.mxu0 0
    %859 = vmatpush.bf16.msra.mxu0 0
    %860 = vmatpush.bf16.msra.mxu0 0
    %861 = vmatpush.bf16.msra.mxu0 %v852
    %862 = vmatmul.bf16.gmra.mxu0 %v849
    %v863 = vpop.f32.mrf.mxu0
    %v864 = vadd.f32 0.0, %v863
    %v865 = vpop.f32.mrf.mxu0
    %866 = vdwg.mxu0
    %v867 = vpack.c.bf16 %v843, %v843
    %v868 = vpack.c.bf16 %v864, %v864
    %871 = vrot.lane.b32.xlu0 %v867, 20
    %v872 = vpop.permute.xlu0 %871
    %873 = vrot.lane.b32.xlu0 %v868, 20
    %v874 = vpop.permute.xlu0 %873
    %vm877 = vcmask 191648
    %878 = vst.msk [vmem:[#allocation2] sm:$0xf] %vm877, %v872
    %879 = vst.msk [vmem:[#allocation2 + $0x4] sm:$0xf] %vm877, %v874
    %880 = vrot.lane.b32.xlu0 %v105, 104
    %v881 = vpop.permute.xlu0 %880
    %882 = vrot.lane.b32.xlu0 %v105, 72
    %v883 = vpop.permute.xlu0 %882
    %v885 = vsel %vm108, %v881, 0
    %v888 = vsel %vm108, %v883, 0
    %890 = vmatpush.bf16.xpose.msra.mxu0 0
    %891 = vmatpush.bf16.xpose.msra.mxu0 0
    %892 = vmatpush.bf16.xpose.msra.mxu0 0
    %893 = vmatpush.bf16.xpose.msra.mxu0 0
    %894 = vmatpush.bf16.xpose.msra.mxu0 0
    %895 = vmatpush.bf16.xpose.msra.mxu0 0
    %896 = vmatpush.bf16.xpose.msra.mxu0 0
    %897 = vmatpush.bf16.xpose.msra.mxu0 %v888
    %898 = vmatmul.bf16.gmra.mxu0 %v885
    %v899 = vpop.f32.mrf.mxu0
    %v900 = vadd.f32 0.0, %v899
    %v901 = vpop.f32.mrf.mxu0
    %902 = vdwg.mxu0
    %903 = vrot.lane.b32.xlu0 %v130, 104
    %v904 = vpop.permute.xlu0 %903
    %905 = vrot.lane.b32.xlu0 %v130, 72
    %v906 = vpop.permute.xlu0 %905
    %v908 = vsel %vm108, %v904, 0
    %v911 = vsel %vm108, %v906, 0
    %913 = vmatpush.bf16.xpose.msra.mxu0 0
    %914 = vmatpush.bf16.xpose.msra.mxu0 0
    %915 = vmatpush.bf16.xpose.msra.mxu0 0
    %916 = vmatpush.bf16.xpose.msra.mxu0 0
    %917 = vmatpush.bf16.xpose.msra.mxu0 0
    %918 = vmatpush.bf16.xpose.msra.mxu0 0
    %919 = vmatpush.bf16.xpose.msra.mxu0 0
    %920 = vmatpush.bf16.xpose.msra.mxu0 %v911
    %921 = vmatmul.bf16.gmra.mxu0 %v908
    %v922 = vpop.f32.mrf.mxu0
    %v923 = vadd.f32 0.0, %v922
    %v924 = vpop.f32.mrf.mxu0
    %925 = vdwg.mxu0
    %v926 = vmul.f32 %v900, 0.5
    %v927 = vmul.f32 %v923, 0.5
    %v928 = vadd.f32 %v926, %v156
    %v929 = vadd.f32 %v927, %v157
    %v930 = vsel %vm162, %v928, -inf
    %931 = vmax.xlane.f32.xlu0 %v930
    %v932 = vpop.xlane.xlu0 %931
    %v933 = vsel %vm162, %v929, -inf
    %934 = vmax.xlane.f32.xlu0 %v933
    %v935 = vpop.xlane.xlu0 %934
    %v936 = vsub.f32 %v928, %v932
    %v937 = vsub.f32 %v929, %v935
    %v938 = vmul.f32 %v936, 1.442695
    %v939 = vpow.pop %v938
    %v940 = vmul.f32 %v937, 1.442695
    %v941 = vpow.pop %v940
    %v942 = vsel %vm162, %v939, 0.0
    %943 = vadd.xlane.f32.xlu0 %v942
    %v944 = vpop.xlane.xlu0 %943
    %v945 = vsel %vm162, %v941, 0.0
    %946 = vadd.xlane.f32.xlu0 %v945
    %v947 = vpop.xlane.xlu0 %946
    %v948 = vrcp.pop %v944
    %v949 = vrcp.pop %v947
    %v950 = vmul.f32 %v939, %v948
    %v951 = vmul.f32 %v941, %v949
    %v952 = vpack.c.bf16 %v950, %v950
    %v953 = vpack.c.bf16 %v951, %v951
    %954 = vrot.lane.b32.xlu0 %v105, 40
    %v955 = vpop.permute.xlu0 %954
    %v957 = vsel %vm162, %v952, 0
    %v960 = vsel %vm192, %v955, 0
    %962 = vmatpush.bf16.msra.mxu0 0
    %963 = vmatpush.bf16.msra.mxu0 0
    %964 = vmatpush.bf16.msra.mxu0 0
    %965 = vmatpush.bf16.msra.mxu0 0
    %966 = vmatpush.bf16.msra.mxu0 0
    %967 = vmatpush.bf16.msra.mxu0 0
    %968 = vmatpush.bf16.msra.mxu0 0
    %969 = vmatpush.bf16.msra.mxu0 %v960
    %970 = vmatmul.bf16.gmra.mxu0 %v957
    %v971 = vpop.f32.mrf.mxu0
    %v972 = vadd.f32 0.0, %v971
    %v973 = vpop.f32.mrf.mxu0
    %974 = vdwg.mxu0
    %975 = vrot.lane.b32.xlu0 %v130, 40
    %v976 = vpop.permute.xlu0 %975
    %v978 = vsel %vm162, %v953, 0
    %v981 = vsel %vm192, %v976, 0
    %983 = vmatpush.bf16.msra.mxu0 0
    %984 = vmatpush.bf16.msra.mxu0 0
    %985 = vmatpush.bf16.msra.mxu0 0
    %986 = vmatpush.bf16.msra.mxu0 0
    %987 = vmatpush.bf16.msra.mxu0 0
    %988 = vmatpush.bf16.msra.mxu0 0
    %989 = vmatpush.bf16.msra.mxu0 0
    %990 = vmatpush.bf16.msra.mxu0 %v981
    %991 = vmatmul.bf16.gmra.mxu0 %v978
    %v992 = vpop.f32.mrf.mxu0
    %v993 = vadd.f32 0.0, %v992
    %v994 = vpop.f32.mrf.mxu0
    %995 = vdwg.mxu0
    %v996 = vpack.c.bf16 %v972, %v972
    %v997 = vpack.c.bf16 %v993, %v993
    %1000 = vrot.lane.b32.xlu0 %v996, 24
    %v1001 = vpop.permute.xlu0 %1000
    %1002 = vrot.lane.b32.xlu0 %v997, 24
    %v1003 = vpop.permute.xlu0 %1002
    %vm1006 = vcmask 224448
    %1007 = vst.msk [vmem:[#allocation2] sm:$0xf] %vm1006, %v1001
    %1008 = vst.msk [vmem:[#allocation2 + $0x4] sm:$0xf] %vm1006, %v1003
    %1009 = vrot.lane.b32.xlu0 %v105, 100
    %v1010 = vpop.permute.xlu0 %1009
    %1011 = vrot.lane.b32.xlu0 %v105, 68
    %v1012 = vpop.permute.xlu0 %1011
    %v1014 = vsel %vm108, %v1010, 0
    %v1017 = vsel %vm108, %v1012, 0
    %1019 = vmatpush.bf16.xpose.msra.mxu0 0
    %1020 = vmatpush.bf16.xpose.msra.mxu0 0
    %1021 = vmatpush.bf16.xpose.msra.mxu0 0
    %1022 = vmatpush.bf16.xpose.msra.mxu0 0
    %1023 = vmatpush.bf16.xpose.msra.mxu0 0
    %1024 = vmatpush.bf16.xpose.msra.mxu0 0
    %1025 = vmatpush.bf16.xpose.msra.mxu0 0
    %1026 = vmatpush.bf16.xpose.msra.mxu0 %v1017
    %1027 = vmatmul.bf16.gmra.mxu0 %v1014
    %v1028 = vpop.f32.mrf.mxu0
    %v1029 = vadd.f32 0.0, %v1028
    %v1030 = vpop.f32.mrf.mxu0
    %1031 = vdwg.mxu0
    %1032 = vrot.lane.b32.xlu0 %v130, 100
    %v1033 = vpop.permute.xlu0 %1032
    %1034 = vrot.lane.b32.xlu0 %v130, 68
    %v1035 = vpop.permute.xlu0 %1034
    %v1037 = vsel %vm108, %v1033, 0
    %v1040 = vsel %vm108, %v1035, 0
    %1042 = vmatpush.bf16.xpose.msra.mxu0 0
    %1043 = vmatpush.bf16.xpose.msra.mxu0 0
    %1044 = vmatpush.bf16.xpose.msra.mxu0 0
    %1045 = vmatpush.bf16.xpose.msra.mxu0 0
    %1046 = vmatpush.bf16.xpose.msra.mxu0 0
    %1047 = vmatpush.bf16.xpose.msra.mxu0 0
    %1048 = vmatpush.bf16.xpose.msra.mxu0 0
    %1049 = vmatpush.bf16.xpose.msra.mxu0 %v1040
    %1050 = vmatmul.bf16.gmra.mxu0 %v1037
    %v1051 = vpop.f32.mrf.mxu0
    %v1052 = vadd.f32 0.0, %v1051
    %v1053 = vpop.f32.mrf.mxu0
    %1054 = vdwg.mxu0
    %v1055 = vmul.f32 %v1029, 0.5
    %v1056 = vmul.f32 %v1052, 0.5
    %v1057 = vadd.f32 %v1055, %v156
    %v1058 = vadd.f32 %v1056, %v157
    %v1059 = vsel %vm162, %v1057, -inf
    %1060 = vmax.xlane.f32.xlu0 %v1059
    %v1061 = vpop.xlane.xlu0 %1060
    %v1062 = vsel %vm162, %v1058, -inf
    %1063 = vmax.xlane.f32.xlu0 %v1062
    %v1064 = vpop.xlane.xlu0 %1063
    %v1065 = vsub.f32 %v1057, %v1061
    %v1066 = vsub.f32 %v1058, %v1064
    %v1067 = vmul.f32 %v1065, 1.442695
    %v1068 = vpow.pop %v1067
    %v1069 = vmul.f32 %v1066, 1.442695
    %v1070 = vpow.pop %v1069
    %v1071 = vsel %vm162, %v1068, 0.0
    %1072 = vadd.xlane.f32.xlu0 %v1071
    %v1073 = vpop.xlane.xlu0 %1072
    %v1074 = vsel %vm162, %v1070, 0.0
    %1075 = vadd.xlane.f32.xlu0 %v1074
    %v1076 = vpop.xlane.xlu0 %1075
    %v1077 = vrcp.pop %v1073
    %v1078 = vrcp.pop %v1076
    %v1079 = vmul.f32 %v1068, %v1077
    %v1080 = vmul.f32 %v1070, %v1078
    %v1081 = vpack.c.bf16 %v1079, %v1079
    %v1082 = vpack.c.bf16 %v1080, %v1080
    %1083 = vrot.lane.b32.xlu0 %v105, 36
    %v1084 = vpop.permute.xlu0 %1083
    %v1086 = vsel %vm162, %v1081, 0
    %v1089 = vsel %vm192, %v1084, 0
    %1091 = vmatpush.bf16.msra.mxu0 0
    %1092 = vmatpush.bf16.msra.mxu0 0
    %1093 = vmatpush.bf16.msra.mxu0 0
    %1094 = vmatpush.bf16.msra.mxu0 0
    %1095 = vmatpush.bf16.msra.mxu0 0
    %1096 = vmatpush.bf16.msra.mxu0 0
    %1097 = vmatpush.bf16.msra.mxu0 0
    %1098 = vmatpush.bf16.msra.mxu0 %v1089
    %1099 = vmatmul.bf16.gmra.mxu0 %v1086
    %v1100 = vpop.f32.mrf.mxu0
    %v1101 = vadd.f32 0.0, %v1100
    %v1102 = vpop.f32.mrf.mxu0
    %1103 = vdwg.mxu0
    %1104 = vrot.lane.b32.xlu0 %v130, 36
    %v1105 = vpop.permute.xlu0 %1104
    %v1107 = vsel %vm162, %v1082, 0
    %v1110 = vsel %vm192, %v1105, 0
    %1112 = vmatpush.bf16.msra.mxu0 0
    %1113 = vmatpush.bf16.msra.mxu0 0
    %1114 = vmatpush.bf16.msra.mxu0 0
    %1115 = vmatpush.bf16.msra.mxu0 0
    %1116 = vmatpush.bf16.msra.mxu0 0
    %1117 = vmatpush.bf16.msra.mxu0 0
    %1118 = vmatpush.bf16.msra.mxu0 0
    %1119 = vmatpush.bf16.msra.mxu0 %v1110
    %1120 = vmatmul.bf16.gmra.mxu0 %v1107
    %v1121 = vpop.f32.mrf.mxu0
    %v1122 = vadd.f32 0.0, %v1121
    %v1123 = vpop.f32.mrf.mxu0
    %1124 = vdwg.mxu0
    %v1125 = vpack.c.bf16 %v1101, %v1101
    %v1126 = vpack.c.bf16 %v1122, %v1122
    %1129 = vrot.lane.b32.xlu0 %v1125, 28
    %v1130 = vpop.permute.xlu0 %1129
    %1131 = vrot.lane.b32.xlu0 %v1126, 28
    %v1132 = vpop.permute.xlu0 %1131
    %vm1135 = vcmask 257248
    %1136 = vst.msk [vmem:[#allocation2] sm:$0xf] %vm1135, %v1130
    %1137 = vst.msk [vmem:[#allocation2 + $0x4] sm:$0xf] %vm1135, %v1132
    %v1138 = vld [vmem:[#allocation2] sm:$0xf]
    %v1139 = vld [vmem:[#allocation2 + $0x4] sm:$0xf]
    %v1140 = vld [vmem:[%s4] sm:$0xf]
    %v1141 = vld [vmem:[%s4 + $0x4] sm:$0xf]
    %v1142 = vld [vmem:[%s4 + $0x8] sm:$0xf]
    %v1143 = vld [vmem:[%s4 + $0xc] sm:$0xf]
    %v1144 = vperm.slane %v50, 0
    %v1147 = vunpack.c.l.b16 %v1138
    %v1148 = vunpack.c.l.b16 %v1139
    %v1149 = vpack.c.b16 %v1148, %v1147
    %v1154 = vunpack.c.l.b16 %v1140
    %v1155 = vunpack.c.l.b16 %v1141
    %v1156 = vunpack.c.l.b16 %v1142
    %v1157 = vunpack.c.l.b16 %v1143
    %v1158 = vpack.c.b16 %v1155, %v1154
    %v1159 = vpack.c.b16 %v1157, %v1156
    %v1163 = vsel %vm83, %v1149, 0
    %1165 = vmatpush.bf16.msra.mxu0 0
    %1166 = vmatpush.bf16.msra.mxu0 0
    %1167 = vmatpush.bf16.msra.mxu0 0
    %1168 = vmatpush.bf16.msra.mxu0 0
    %1169 = vmatpush.bf16.msra.mxu0 0
    %1170 = vmatpush.bf16.msra.mxu0 0
    %1171 = vmatpush.bf16.msra.mxu0 %v1159
    %1172 = vmatpush.bf16.msra.mxu0 %v1158
    %1173 = vmatmul.bf16.gmra.mxu0 %v1163
    %v1174 = vpop.f32.mrf.mxu0
    %v1175 = vadd.f32 %v1144, %v1174
    %v1176 = vpop.f32.mrf.mxu0
    %v1177 = vadd.f32 %v1144, %v1176
    %1178 = vdwg.mxu0
    %v1179 = vadd.f32 %v48, %v1175
    %v1180 = vadd.f32 %v49, %v1177
    %v1181 = vsel %vm83, %v1179, 0.0
    %1182 = vadd.xlane.f32.xlu0 %v1181
    %v1183 = vpop.xlane.xlu0 %1182
    %v1184 = vsel %vm83, %v1180, 0.0
    %1185 = vadd.xlane.f32.xlu0 %v1184
    %v1186 = vpop.xlane.xlu0 %1185
    %v1187 = vrcp.pop 32.0
    %v1188 = vmul.f32 32.0, %v1187
    %v1189 = vsub.f32 1.0, %v1188
    %v1190 = vmul.f32 %v1187, %v1189
    %v1191 = vadd.f32 %v1187, %v1190
    %vm1192 = vweird.f32 %v1187
    %v1193 = vsel %vm1192, %v1187, %v1191
    %v1194 = vmul.f32 %v1183, %v1193
    %v1195 = vmul.f32 %v1186, %v1193
    %v1196 = vsub.f32 %v1179, %v1194
    %v1197 = vsub.f32 %v1180, %v1195
    %v1198 = vmul.f32 %v1196, %v1196
    %v1199 = vmul.f32 %v1197, %v1197
    %v1200 = vsel %vm83, %v1198, 0.0
    %1201 = vadd.xlane.f32.xlu0 %v1200
    %v1202 = vpop.xlane.xlu0 %1201
    %v1203 = vsel %vm83, %v1199, 0.0
    %1204 = vadd.xlane.f32.xlu0 %v1203
    %v1205 = vpop.xlane.xlu0 %1204
    %v1206 = vmul.f32 %v1202, %v1193
    %v1207 = vmul.f32 %v1205, %v1193
    %v1208 = vadd.f32 %v1206, 1e-05
    %v1209 = vadd.f32 %v1207, 1e-05
    %v1210 = vrsqrt.pop %v1208
    %v1211 = vmul.f32 %v1210, %v1208
    %v1212 = vmul.f32 %v1211, %v1210
    %v1213 = vmul.f32 0.5, %v1212
    %v1214 = vsub.f32 1.5, %v1213
    %v1215 = vmul.f32 %v1210, %v1214
    %vm1216 = vweird.f32 %v1208
    %vm1217 = vweird.f32 %v1210
    %vm1218 = vmor %vm1216, %vm1217
    %v1219 = vsel %vm1218, %v1210, %v1215
    %v1220 = vrsqrt.pop %v1209
    %v1221 = vmul.f32 %v1220, %v1209
    %v1222 = vmul.f32 %v1221, %v1220
    %v1223 = vmul.f32 0.5, %v1222
    %v1224 = vsub.f32 1.5, %v1223
    %v1225 = vmul.f32 %v1220, %v1224
    %vm1226 = vweird.f32 %v1209
    %vm1227 = vweird.f32 %v1220
    %vm1228 = vmor %vm1226, %vm1227
    %v1229 = vsel %vm1228, %v1220, %v1225
    %v1230 = vmul.f32 %v1196, %v1219
    %v1231 = vmul.f32 %v1197, %v1229
    %v1232 = vperm.slane %v50, 1
    %v1233 = vmul.f32 %v1230, %v1232
    %v1234 = vmul.f32 %v1231, %v1232
    %v1235 = vperm.slane %v50, 2
    %v1236 = vadd.f32 %v1233, %v1235
    %v1237 = vadd.f32 %v1234, %v1235
    %v1238 = vpack.c.bf16 %v1236, %v1236
    %v1239 = vpack.c.bf16 %v1237, %v1237
    %v1240 = vld [vmem:[%s5] sm:$0xf]
    %v1241 = vld [vmem:[%s5 + $0x4] sm:$0xf]
    %v1242 = vld [vmem:[%s5 + $0x8] sm:$0xf]
    %v1243 = vld [vmem:[%s5 + $0xc] sm:$0xf]
    %v1244 = vld [vmem:[%s6] sm:$0x1]
    %v1246 = vperm.slane %v1244, 0
    %v1250 = vunpack.c.l.b16 %v1238
    %v1251 = vunpack.c.l.b16 %v1239
    %v1252 = vpack.c.b16 %v1251, %v1250
    %v1257 = vunpack.c.l.b16 %v1240
    %v1258 = vunpack.c.l.b16 %v1241
    %v1259 = vunpack.c.l.b16 %v1242
    %v1260 = vunpack.c.l.b16 %v1243
    %v1261 = vpack.c.b16 %v1258, %v1257
    %v1262 = vpack.c.b16 %v1260, %v1259
    %v1266 = vsel %vm83, %v1252, 0
    %1268 = vmatpush.bf16.msra.mxu0 0
    %1269 = vmatpush.bf16.msra.mxu0 0
    %1270 = vmatpush.bf16.msra.mxu0 0
    %1271 = vmatpush.bf16.msra.mxu0 0
    %1272 = vmatpush.bf16.msra.mxu0 0
    %1273 = vmatpush.bf16.msra.mxu0 0
    %1274 = vmatpush.bf16.msra.mxu0 %v1262
    %1275 = vmatpush.bf16.msra.mxu0 %v1261
    %1276 = vmatmul.bf16.gmra.mxu0 %v1266
    %v1277 = vpop.f32.mrf.mxu0
    %v1278 = vadd.f32 %v1246, %v1277
    %v1279 = vpop.f32.mrf.mxu0
    %v1280 = vadd.f32 %v1246, %v1279
    %1281 = vdwg.mxu0
    %v1282 = vmul.f32 %v1278, %v1278
    %v1283 = vmul.f32 %v1280, %v1280
    %v1284 = vmul.f32 %v1278, %v1282
    %v1285 = vmul.f32 %v1280, %v1283
    %v1286 = vmul.f32 %v1284, 0.044715
    %v1287 = vmul.f32 %v1285, 0.044715
    %v1288 = vadd.f32 %v1278, %v1286
    %v1289 = vadd.f32 %v1280, %v1287
    %v1290 = vmul.f32 %v1288, 0.7978846
    %v1291 = vmul.f32 %v1289, 0.7978846
    %v1292 = vtanh.pop %v1290
    %v1293 = vtanh.pop %v1291
    %v1294 = vadd.f32 %v1292, 1.0
    %v1295 = vadd.f32 %v1293, 1.0
    %v1296 = vmul.f32 %v1294, 0.5
    %v1297 = vmul.f32 %v1295, 0.5
    %v1298 = vmul.f32 %v1278, %v1296
    %v1299 = vmul.f32 %v1280, %v1297
    %v1300 = vpack.c.bf16 %v1299, %v1298
    %v1301 = vld [vmem:[%s7] sm:$0xf]
    %v1302 = vld [vmem:[%s7 + $0x4] sm:$0xf]
    %v1303 = vld [vmem:[%s7 + $0x8] sm:$0xf]
    %v1304 = vld [vmem:[%s7 + $0xc] sm:$0xf]
    %v1305 = vld [vmem:[%s7 + $0x10] sm:$0xf]
    %v1306 = vld [vmem:[%s7 + $0x14] sm:$0xf]
    %v1307 = vld [vmem:[%s7 + $0x18] sm:$0xf]
    %v1308 = vld [vmem:[%s7 + $0x1c] sm:$0xf]
    %v1309 = vperm.slane %v50, 3
    %v1318 = vunpack.c.l.b16 %v1301
    %v1319 = vunpack.c.l.b16 %v1302
    %v1320 = vunpack.c.l.b16 %v1303
    %v1321 = vunpack.c.l.b16 %v1304
    %v1322 = vunpack.c.l.b16 %v1305
    %v1323 = vunpack.c.l.b16 %v1306
    %v1324 = vunpack.c.l.b16 %v1307
    %v1325 = vunpack.c.l.b16 %v1308
    %v1326 = vpack.c.b16 %v1319, %v1318
    %v1327 = vpack.c.b16 %v1321, %v1320
    %v1328 = vpack.c.b16 %v1323, %v1322
    %v1329 = vpack.c.b16 %v1325, %v1324
    %vm1334 = vcmask 523264
    %v1336 = vsel %vm1334, %v1300, 0
    %1338 = vmatpush.bf16.msra.mxu0 0
    %1339 = vmatpush.bf16.msra.mxu0 0
    %1340 = vmatpush.bf16.msra.mxu0 0
    %1341 = vmatpush.bf16.msra.mxu0 0
    %1342 = vmatpush.bf16.msra.mxu0 %v1329
    %1343 = vmatpush.bf16.msra.mxu0 %v1328
    %1344 = vmatpush.bf16.msra.mxu0 %v1327
    %1345 = vmatpush.bf16.msra.mxu0 %v1326
    %1346 = vmatmul.bf16.gmra.mxu0 %v1336
    %v1347 = vpop.f32.mrf.mxu0
    %v1348 = vadd.f32 %v1309, %v1347
    %v1349 = vpop.f32.mrf.mxu0
    %v1350 = vadd.f32 %v1309, %v1349
    %1351 = vdwg.mxu0
    %v1352 = vadd.f32 %v1236, %v1348
    %v1353 = vadd.f32 %v1237, %v1350
    %v1354 = vsel %vm83, %v1352, 0.0
    %1355 = vadd.xlane.f32.xlu0 %v1354
    %v1356 = vpop.xlane.xlu0 %1355
    %v1357 = vsel %vm83, %v1353, 0.0
    %1358 = vadd.xlane.f32.xlu0 %v1357
    %v1359 = vpop.xlane.xlu0 %1358
    %v1360 = vmul.f32 %v1356, %v1193
    %v1361 = vmul.f32 %v1359, %v1193
    %v1362 = vsub.f32 %v1352, %v1360
    %v1363 = vsub.f32 %v1353, %v1361
    %v1364 = vmul.f32 %v1362, %v1362
    %v1365 = vmul.f32 %v1363, %v1363
    %v1366 = vsel %vm83, %v1364, 0.0
    %1367 = vadd.xlane.f32.xlu0 %v1366
    %v1368 = vpop.xlane.xlu0 %1367
    %v1369 = vsel %vm83, %v1365, 0.0
    %1370 = vadd.xlane.f32.xlu0 %v1369
    %v1371 = vpop.xlane.xlu0 %1370
    %v1372 = vmul.f32 %v1368, %v1193
    %v1373 = vmul.f32 %v1371, %v1193
    %v1374 = vadd.f32 %v1372, 1e-05
    %v1375 = vadd.f32 %v1373, 1e-05
    %v1376 = vrsqrt.pop %v1374
    %v1377 = vmul.f32 %v1376, %v1374
    %v1378 = vmul.f32 %v1377, %v1376
    %v1379 = vmul.f32 0.5, %v1378
    %v1380 = vsub.f32 1.5, %v1379
    %v1381 = vmul.f32 %v1376, %v1380
    %vm1382 = vweird.f32 %v1374
    %vm1383 = vweird.f32 %v1376
    %vm1384 = vmor %vm1382, %vm1383
    %v1385 = vsel %vm1384, %v1376, %v1381
    %v1386 = vrsqrt.pop %v1375
    %v1387 = vmul.f32 %v1386, %v1375
    %v1388 = vmul.f32 %v1387, %v1386
    %v1389 = vmul.f32 0.5, %v1388
    %v1390 = vsub.f32 1.5, %v1389
    %v1391 = vmul.f32 %v1386, %v1390
    %vm1392 = vweird.f32 %v1375
    %vm1393 = vweird.f32 %v1386
    %vm1394 = vmor %vm1392, %vm1393
    %v1395 = vsel %vm1394, %v1386, %v1391
    %v1396 = vmul.f32 %v1362, %v1385
    %v1397 = vmul.f32 %v1363, %v1395
    %v1398 = vperm.slane %v50, 4
    %v1399 = vmul.f32 %v1396, %v1398
    %v1400 = vmul.f32 %v1397, %v1398
    %v1401 = vperm.slane %v50, 5
    %v1402 = vadd.f32 %v1399, %v1401
    %v1403 = vadd.f32 %v1400, %v1401
    %v1404 = vpack.c.bf16 %v1402, %v1402
    %v1405 = vpack.c.bf16 %v1403, %v1403
    %v1406 = vld [vmem:[%s8] sm:$0xf]
    %v1407 = vld [vmem:[%s8 + $0x4] sm:$0xf]
    %v1408 = vld [vmem:[%s8 + $0x8] sm:$0xf]
    %v1409 = vld [vmem:[%s8 + $0xc] sm:$0xf]
    %v1410 = vperm.slane %v50, 6
    %v1413 = vunpack.c.l.b16 %v1404
    %v1414 = vunpack.c.l.b16 %v1405
    %v1415 = vrot.slane %v1414, 7
    %vm1416 = vcmask 1041409
    %v1417 = vsel %vm1416, %v1415, %v1413
    %v1418 = vpack.c.b16 %v1417, %v1417
    %v1423 = vunpack.c.l.b16 %v1406
    %v1424 = vunpack.c.l.b16 %v1407
    %v1425 = vunpack.c.l.b16 %v1408
    %v1426 = vunpack.c.l.b16 %v1409
    %v1427 = vpack.c.b16 %v1424, %v1423
    %v1428 = vpack.c.b16 %v1426, %v1425
    %v1432 = vsel %vm83, %v1418, 0
    %1434 = vmatpush.bf16.msra.mxu0 0
    %1435 = vmatpush.bf16.msra.mxu0 0
    %1436 = vmatpush.bf16.msra.mxu0 0
    %1437 = vmatpush.bf16.msra.mxu0 0
    %1438 = vmatpush.bf16.msra.mxu0 0
    %1439 = vmatpush.bf16.msra.mxu0 0
    %1440 = vmatpush.bf16.msra.mxu0 %v1428
    %1441 = vmatpush.bf16.msra.mxu0 %v1427
    %1442 = vmatmul.bf16.gmra.mxu0 %v1432
    %v1443 = vpop.f32.mrf.mxu0
    %v1444 = vadd.f32 %v1410, %v1443
    %v1445 = vpop.f32.mrf.mxu0
    %1446 = vdwg.mxu0
    %v1447 = vpack.c.bf16 %v1444, %v1444
    %v1448 = vld [vmem:[%s9] sm:$0xf]
    %v1449 = vld [vmem:[%s9 + $0x4] sm:$0xf]
    %v1450 = vld [vmem:[%s9 + $0x8] sm:$0xf]
    %v1451 = vld [vmem:[%s9 + $0xc] sm:$0xf]
    %v1452 = vperm.slane %v50, 7
    %v1457 = vunpack.c.l.b16 %v1448
    %v1458 = vunpack.c.l.b16 %v1449
    %v1459 = vunpack.c.l.b16 %v1450
    %v1460 = vunpack.c.l.b16 %v1451
    %v1461 = vpack.c.b16 %v1458, %v1457
    %v1462 = vpack.c.b16 %v1460, %v1459
    %v1466 = vsel %vm83, %v1447, 0
    %1468 = vmatpush.bf16.msra.mxu0 0
    %1469 = vmatpush.bf16.msra.mxu0 0
    %1470 = vmatpush.bf16.msra.mxu0 0
    %1471 = vmatpush.bf16.msra.mxu0 0
    %1472 = vmatpush.bf16.msra.mxu0 0
    %1473 = vmatpush.bf16.msra.mxu0 0
    %1474 = vmatpush.bf16.msra.mxu0 %v1462
    %1475 = vmatpush.bf16.msra.mxu0 %v1461
    %1476 = vmatmul.bf16.gmra.mxu0 %v1466
    %v1477 = vpop.f32.mrf.mxu0
    %v1478 = vadd.f32 %v1452, %v1477
    %v1479 = vpop.f32.mrf.mxu0
    %1480 = vdwg.mxu0
    %v1483 = vrot.slane %v1403, 7
    %v1484 = vsel %vm1416, %v1483, %v1402
    %v1486 = vadd.f32 %v1478, %v1484
    %vm1487 = vcmask 254976
    %v1488 = vsel %vm1487, %v1486, 0.0
    %1489 = vadd.xlane.f32.xlu0 %v1488
    %v1490 = vpop.xlane.xlu0 %1489
    %v1491 = vmul.f32 %v1490, %v1193
    %v1492 = vsub.f32 %v1486, %v1491
    %v1493 = vmul.f32 %v1492, %v1492
    %v1494 = vsel %vm1487, %v1493, 0.0
    %1495 = vadd.xlane.f32.xlu0 %v1494
    %v1496 = vpop.xlane.xlu0 %1495
    %v1497 = vmul.f32 %v1496, %v1193
    %v1498 = vadd.f32 %v1497, 1e-05
    %v1499 = vrsqrt.pop %v1498
    %v1500 = vmul.f32 %v1499, %v1498
    %v1501 = vmul.f32 %v1500, %v1499
    %v1502 = vmul.f32 0.5, %v1501
    %v1503 = vsub.f32 1.5, %v1502
    %v1504 = vmul.f32 %v1499, %v1503
    %vm1505 = vweird.f32 %v1498
    %vm1506 = vweird.f32 %v1499
    %vm1507 = vmor %vm1505, %vm1506
    %v1508 = vsel %vm1507, %v1499, %v1504
    %v1509 = vmul.f32 %v1492, %v1508
    %v1510 = vperm.slane %v51, 0
    %v1511 = vmul.f32 %v1509, %v1510
    %v1512 = vperm.slane %v51, 1
    %v1513 = vadd.f32 %v1511, %v1512
    %v1514 = vpack.c.bf16 %v1513, %v1513
    %v1515 = vld [vmem:[%s10] sm:$0xf]
    %v1516 = vld [vmem:[%s10 + $0x4] sm:$0xf]
    %v1517 = vld [vmem:[%s10 + $0x8] sm:$0xf]
    %v1518 = vld [vmem:[%s10 + $0xc] sm:$0xf]
    %v1519 = vld [vmem:[%s11] sm:$0x1]
    %v1521 = vperm.slane %v1519, 0
    %v1527 = vunpack.c.l.b16 %v1515
    %v1528 = vunpack.c.l.b16 %v1516
    %v1529 = vunpack.c.l.b16 %v1517
    %v1530 = vunpack.c.l.b16 %v1518
    %v1531 = vpack.c.b16 %v1528, %v1527
    %v1532 = vpack.c.b16 %v1530, %v1529
    %v1536 = vsel %vm83, %v1514, 0
    %1538 = vmatpush.bf16.msra.mxu0 0
    %1539 = vmatpush.bf16.msra.mxu0 0
    %1540 = vmatpush.bf16.msra.mxu0 0
    %1541 = vmatpush.bf16.msra.mxu0 0
    %1542 = vmatpush.bf16.msra.mxu0 0
    %1543 = vmatpush.bf16.msra.mxu0 0
    %1544 = vmatpush.bf16.msra.mxu0 %v1532
    %1545 = vmatpush.bf16.msra.mxu0 %v1531
    %1546 = vmatmul.bf16.gmra.mxu0 %v1536
    %v1547 = vpop.f32.mrf.mxu0
    %v1548 = vadd.f32 %v1521, %v1547
    %v1549 = vpop.f32.mrf.mxu0
    %1550 = vdwg.mxu0
    %1551 = vst [vmem:[#allocation3] sm:$0x3] %v1548
    // Predicated region
    $region54: #{cultural_pattern_classifier.1} parent=1 // pred_check
      _
    $region55: #{cultural_pattern_classifier.1} parent=1 // pred_check_branch
      %1553 = sbr.rel (0) target = $region57
    $region56: #{cultural_pattern_classifier.1} parent=1 // pred_region
      %1555 = vsyncadd [#allocation4], 0
      %s1557 = sshll.u32 [#allocation3], 4
      %s1558 = int_to_ptr.vmem [resolvable:$true] %s1557
      %s1559 = sshll.u32 %s13, 4
      %s1560 = int_to_ptr.hbm [resolvable:$true] %s1559
      %1562 = dma.vmem_to_hbm [thread:$0]  %s1558, 32, %s1560, [#allocation4]
    $region57: #{cultural_pattern_classifier.1} parent=1 // pred_fallthru
      _
    // Predicated region
    $region58: #{cultural_pattern_classifier.1} parent=1 // pred_check
      _
    $region59: #{cultural_pattern_classifier.1} parent=1 // pred_check_branch
      %1564 = sbr.rel (0) target = $region61
    $region60: #{cultural_pattern_classifier.1} parent=1 // pred_region
      %1566 = dma.done [#allocation4], 32
    $region61: #{cultural_pattern_classifier.1} parent=1 // pred_fallthru
      _
    %1567 = vsyncpa [#allocation4], 1

</llo_original>
